<compile_context>
chip_gen: v5e
topology: v5e:2x2
jax: 0.10.0
libtpu: 0.0.40
codegen_flags: <defaults>
</compile_context>

<pallas_src>
import functools

import jax
import jax.numpy as jnp
from jax.experimental import pallas as pl
from jax.experimental.pallas import tpu as pltpu

LANE = 128
BATCH_ALIGN = 16          # bf16 packs 16 rows per vreg (sublane packing)


def _round_up(x, m):
    return ((x + m - 1) // m) * m


def _fc_kernel(x_ref,
               w1_ref, b1_ref,
               w2_ref, b2_ref,
               w3_ref, b3_ref,
               w4_ref, b4_ref,
               w5_ref, b5_ref,
               o_ref):
    """Fused 5-layer MLP on one (TB, F_pad) batch tile.

    Weights are bf16 (lane-padded), biases f32, MXU accumulation in f32.
    Dropout layers are identity (eval-mode forward).
    """
    # Cast the f32 activation tile to bf16 in-kernel (no wrapper-side HBM pass).
    h = x_ref[...].astype(jnp.bfloat16)

    def layer(h, w_ref, b_ref):
        # bf16 x bf16 -> f32 accumulate; bias + ReLU in f32; single bf16 cast.
        y = jnp.dot(h, w_ref[...], preferred_element_type=jnp.float32)
        y = jnp.maximum(y + b_ref[...], 0.0)
        return y.astype(jnp.bfloat16)

    h = layer(h, w1_ref, b1_ref)   # (TB, Fp)   -> (TB, H/2p)  (+ Dropout = identity)
    h = layer(h, w2_ref, b2_ref)   # (TB, H/2p) -> (TB, Hp)    (+ Dropout = identity)
    h = layer(h, w3_ref, b3_ref)   # (TB, Hp)   -> (TB, 2Hp)   (+ Dropout = identity)
    h = layer(h, w4_ref, b4_ref)   # (TB, 2Hp)  -> (TB, Hp)    (+ Dropout = identity)
    # Final linear, no activation, lane-dense f32 store.
    o_ref[...] = (jnp.dot(h, w5_ref[...], preferred_element_type=jnp.float32)
                  + b5_ref[...]).astype(o_ref.dtype)


def prepare_params(params):
    """One-time prep: zero-pad every feature dim to a multiple of 128 lanes and
    cast weights to bf16.  Cache the result; the per-call path never re-reads
    the raw weights."""
    dims = [params[0][0].shape[0]] + [w.shape[1] for w, _ in params]
    pdims = [_round_up(d, LANE) for d in dims]
    padded = []
    for li, (w, b) in enumerate(params):
        d_in, d_out = w.shape
        pi, po = pdims[li], pdims[li + 1]
        wp = jnp.zeros((pi, po), jnp.float32).at[:d_in, :d_out].set(w)
        bp = jnp.zeros((1, po), jnp.float32).at[:, :d_out].set(jnp.reshape(b, (1, -1)))
        padded.append((wp.astype(jnp.bfloat16), bp))
    feat_in, out_dim = dims[0], dims[-1]
    return tuple(padded), feat_in, out_dim


def _pick_batch_tile(batch, batch_tile):
    """Batch tile: multiple of 16, minimal pad waste, >=2 grid steps when possible."""
    b_align = _round_up(max(batch, 1), BATCH_ALIGN)
    cap = min(_round_up(batch_tile, BATCH_ALIGN), b_align)
    if b_align >= 2 * BATCH_ALIGN:
        # Guarantee >= 2 grid steps: shards the "parallel" batch axis across the
        # two v7x TensorCores and lets x/out tile DMAs overlap compute.
        cap = min(cap, max(BATCH_ALIGN, (b_align // 2) // BATCH_ALIGN * BATCH_ALIGN))
    best_tb, best_waste = BATCH_ALIGN, None
    for tb in range(cap, BATCH_ALIGN - 1, -BATCH_ALIGN):
        waste = _round_up(b_align, tb) - b_align
        if best_waste is None or waste < best_waste:
            best_tb, best_waste = tb, waste
    return best_tb, _round_up(b_align, best_tb)


@functools.partial(
    jax.jit, static_argnames=("out_dim", "batch_tile", "single_buffer_weights"))
def _fc_forward(x, padded_params, *, out_dim, batch_tile, single_buffer_weights):
    B = x.shape[0]
    x2d = x.reshape(B, -1).astype(jnp.float32)        # x.view(B, -1)
    p_in = padded_params[0][0].shape[0]
    p_out = padded_params[-1][0].shape[1]
    pdims = [p_in] + [wp.shape[1] for wp, _ in padded_params]

    tb, b_pad = _pick_batch_tile(B, batch_tile)
    grid = (b_pad // tb,)

    # Fast path: skip the pad copy entirely when batch & features are aligned.
    pad_rows, pad_cols = b_pad - B, p_in - x2d.shape[1]
    if pad_rows or pad_cols:
        x2d = jnp.pad(x2d, ((0, pad_rows), (0, pad_cols)))

    # Weights/biases never change across the grid -> constant index_map,
    # single-buffered (halves resident weight VMEM vs default double-buffering).
    def resident_spec(shape):
        if single_buffer_weights:
            return pl.BlockSpec(shape, lambda i: (0, 0), pipeline_mode=pl.Buffered(1))
        return pl.BlockSpec(shape, lambda i: (0, 0))

    in_specs = [pl.BlockSpec((tb, p_in), lambda i: (i, 0))]
    flat_args = [x2d]
    for wp, bp in padded_params:
        in_specs.append(resident_spec(wp.shape))
        in_specs.append(resident_spec(bp.shape))
        flat_args += [wp, bp]
    out_spec = pl.BlockSpec((tb, p_out), lambda i: (i, 0))

    # ---- cost estimate ---------------------------------------------------------
    flops = 2 * b_pad * sum(pdims[i] * pdims[i + 1] for i in range(len(pdims) - 1))
    bytes_accessed = (sum(int(a.size) * a.dtype.itemsize for a in flat_args)
                      + b_pad * p_out * 4)
    cost = pl.CostEstimate(flops=flops, transcendentals=0,
                           bytes_accessed=bytes_accessed)

    # ---- VMEM budget (buffer-count-aware) ---------------------------------------
    wbuf = 1 if single_buffer_weights else 2
    weight_bytes = wbuf * sum(int(wp.size) * 2 + int(bp.size) * 4
                              for wp, bp in padded_params)
    io_bytes = 2 * tb * (p_in + p_out) * 4                       # double-buffered x/out tiles
    act_pair = max(pdims[i] * 2 + pdims[i + 1] * 4               # bf16 in + f32 matmul out
                   for i in range(len(pdims) - 1))
    act_bytes = tb * (act_pair + max(pdims) * 2)                 # + bf16 copy of the result
    working_set = weight_bytes + io_bytes + act_bytes
    try:
        vmem_cap = int(pltpu.get_tpu_info().vmem_capacity_bytes)
    except Exception:
        vmem_cap = 64 << 20   # assume the smallest per-core VMEM (v7x) if query fails
    vmem_limit = int(min(vmem_cap * 7 // 8, max(2 * working_set, 32 << 20)))

    out = pl.pallas_call(
        _fc_kernel,
        out_shape=jax.ShapeDtypeStruct((b_pad, p_out), jnp.float32),
        grid=grid,
        in_specs=in_specs,
        out_specs=out_spec,
        compiler_params=pltpu.CompilerParams(
            dimension_semantics=("parallel",),
            vmem_limit_bytes=vmem_limit),
        cost_estimate=cost,
    )(*flat_args)
    # Padded batch rows / lanes carry garbage (ReLU(bias) propagation); this
    # slice is mandatory for correctness.
    return out[:B, :out_dim]


def fc_network_forward(x, prepared, *, batch_tile=256, single_buffer_weights=True):
    """x: (B, C, W, H) float32.  prepared: output of prepare_params(params)."""
    padded_params, feat_in, out_dim = prepared
    # The module's nn.Linear uses width*height (channels ignored); only C==1 type-checks.
    assert x.reshape(x.shape[0], -1).shape[1] == feat_in, (
        "FCNetwork forward requires C == 1 (width*height in_features)")
    return _fc_forward(x, padded_params, out_dim=out_dim, batch_tile=batch_tile,
                       single_buffer_weights=single_buffer_weights)


def init_params(input_data_shape, hidden_layer_num, output_data_num, key):
    """Deterministic init matching the nn.Sequential layer shapes in FCNetwork."""
    num_channels, width, height = input_data_shape
    in_feat = width * height                      # matches nn.Linear(width*height, ...)
    h = hidden_layer_num
    dims = [in_feat, h // 2, h, h * 2, h, output_data_num]

    params = []
    for i in range(len(dims) - 1):
        key, kw, kb = jax.random.split(key, 3)
        scale = 1.0 / float(dims[i]) ** 0.5
        w = jax.random.uniform(kw, (dims[i], dims[i + 1]), jnp.float32, -scale, scale)
        b = jax.random.uniform(kb, (1, dims[i + 1]), jnp.float32, -scale, scale)
        params.append((w, b))
    return params


if __name__ == "__main__":
    # Shapes consistent with the module: the first Linear uses W*H features,
    # so C must be 1 for forward to type-check.
    batch = 2
    input_data_shape = (1, 16, 16)   # (C, W, H)
    hidden_layer_num = 32
    output_data_num = 10

    key = jax.random.PRNGKey(0)
    key, kx = jax.random.split(key)
    x = jax.random.normal(kx, (batch, *input_data_shape), jnp.float32)   # NCHW

    params = init_params(input_data_shape, hidden_layer_num, output_data_num, key)
    prepared = prepare_params(params)   # one-time weight pad + bf16 cast (cached)

    out = None
    for single_buffer in (True, False):   # fall back if Buffered(1) is unsupported
        try:
            out = fc_network_forward(x, prepared, single_buffer_weights=single_buffer)
            out = jax.block_until_ready(out)
            break
        except Exception:
            if not single_buffer:
                raise
    assert out.shape == (batch, output_data_num)

    # Reference path mimicking the kernel's bf16 weight/activation quantization
    # (f32 math on bf16-rounded values), dropout = identity (eval mode).
    h = x.reshape(batch, -1).astype(jnp.float32)
    for i, (w, b) in enumerate(params):
        hq = h.astype(jnp.bfloat16).astype(jnp.float32)
        wq = w.astype(jnp.bfloat16).astype(jnp.float32)
        h = hq @ wq + b
        if i < len(params) - 1:
            h = jnp.maximum(h, 0.0)
    assert jnp.allclose(out, h, atol=2e-2, rtol=2e-2), (
        float(jnp.max(jnp.abs(out - h))))

    print("KERNEL_OK")
</pallas_src>

<mosaic_0001>
module attributes {stable_mosaic.version = 11 : i64} {
  func.func @_fc_kernel(%arg0: i32, %arg1: memref<16x256xf32, #tpu.memory_space<vmem>>, %arg2: memref<256x128xbf16, #tpu.memory_space<vmem>>, %arg3: memref<1x128xf32, #tpu.memory_space<vmem>>, %arg4: memref<128x128xbf16, #tpu.memory_space<vmem>>, %arg5: memref<1x128xf32, #tpu.memory_space<vmem>>, %arg6: memref<128x128xbf16, #tpu.memory_space<vmem>>, %arg7: memref<1x128xf32, #tpu.memory_space<vmem>>, %arg8: memref<128x128xbf16, #tpu.memory_space<vmem>>, %arg9: memref<1x128xf32, #tpu.memory_space<vmem>>, %arg10: memref<128x128xbf16, #tpu.memory_space<vmem>>, %arg11: memref<1x128xf32, #tpu.memory_space<vmem>>, %arg12: memref<16x128xf32, #tpu.memory_space<vmem>>) attributes {dimension_semantics = [#tpu.dimension_semantics<parallel>], iteration_bounds = array<i64: 1>, scalar_prefetch = 0 : i64, scratch_operands = 0 : i64, tpu.core_type = #tpu.core_type<tc>, window_params = [{transform_indices = @transform_0, window_bounds = array<i64: 16, 256>}, {pipeline_mode = #tpu.pipeline_mode<synchronous>, transform_indices = @transform_1, window_bounds = array<i64: 256, 128>}, {pipeline_mode = #tpu.pipeline_mode<synchronous>, transform_indices = @transform_2, window_bounds = array<i64: 1, 128>}, {pipeline_mode = #tpu.pipeline_mode<synchronous>, transform_indices = @transform_3, window_bounds = array<i64: 128, 128>}, {pipeline_mode = #tpu.pipeline_mode<synchronous>, transform_indices = @transform_4, window_bounds = array<i64: 1, 128>}, {pipeline_mode = #tpu.pipeline_mode<synchronous>, transform_indices = @transform_5, window_bounds = array<i64: 128, 128>}, {pipeline_mode = #tpu.pipeline_mode<synchronous>, transform_indices = @transform_6, window_bounds = array<i64: 1, 128>}, {pipeline_mode = #tpu.pipeline_mode<synchronous>, transform_indices = @transform_7, window_bounds = array<i64: 128, 128>}, {pipeline_mode = #tpu.pipeline_mode<synchronous>, transform_indices = @transform_8, window_bounds = array<i64: 1, 128>}, {pipeline_mode = #tpu.pipeline_mode<synchronous>, transform_indices = @transform_9, window_bounds = array<i64: 128, 128>}, {pipeline_mode = #tpu.pipeline_mode<synchronous>, transform_indices = @transform_10, window_bounds = array<i64: 1, 128>}, {transform_indices = @transform_11, window_bounds = array<i64: 16, 128>}]} {
    %c0 = arith.constant 0 : index
    %c0_0 = arith.constant 0 : index
    %0 = vector.load %arg1[%c0, %c0_0] : memref<16x256xf32, #tpu.memory_space<vmem>>, vector<16x256xf32>
    %1 = arith.truncf %0 : vector<16x256xf32> to vector<16x256xbf16>
    %c0_1 = arith.constant 0 : index
    %c0_2 = arith.constant 0 : index
    %2 = vector.load %arg2[%c0_1, %c0_2] : memref<256x128xbf16, #tpu.memory_space<vmem>>, vector<256x128xbf16>
    %cst = arith.constant dense<0.000000e+00> : vector<16x128xf32>
    %3 = tpu.matmul %1, %2, %cst {dimension_numbers = #tpu.dot_dimension_numbers<[1], [0], [0], [1], [0, 0, 1, 1], [], []>} : vector<16x256xbf16>, vector<256x128xbf16>, vector<16x128xf32> -> vector<16x128xf32>
    %c0_3 = arith.constant 0 : index
    %c0_4 = arith.constant 0 : index
    %4 = vector.load %arg3[%c0_3, %c0_4] : memref<1x128xf32, #tpu.memory_space<vmem>>, vector<1x128xf32>
    %5 = vector.broadcast %4 : vector<1x128xf32> to vector<16x128xf32>
    %6 = arith.addf %3, %5 : vector<16x128xf32>
    %cst_5 = arith.constant 0.000000e+00 : f32
    %7 = vector.broadcast %cst_5 : f32 to vector<16x128xf32>
    %8 = arith.maximumf %6, %7 : vector<16x128xf32>
    %9 = arith.truncf %8 : vector<16x128xf32> to vector<16x128xbf16>
    %c0_6 = arith.constant 0 : index
    %c0_7 = arith.constant 0 : index
    %10 = vector.load %arg4[%c0_6, %c0_7] : memref<128x128xbf16, #tpu.memory_space<vmem>>, vector<128x128xbf16>
    %cst_8 = arith.constant dense<0.000000e+00> : vector<16x128xf32>
    %11 = tpu.matmul %9, %10, %cst_8 {dimension_numbers = #tpu.dot_dimension_numbers<[1], [0], [0], [1], [0, 0, 1, 1], [], []>} : vector<16x128xbf16>, vector<128x128xbf16>, vector<16x128xf32> -> vector<16x128xf32>
    %c0_9 = arith.constant 0 : index
    %c0_10 = arith.constant 0 : index
    %12 = vector.load %arg5[%c0_9, %c0_10] : memref<1x128xf32, #tpu.memory_space<vmem>>, vector<1x128xf32>
    %13 = vector.broadcast %12 : vector<1x128xf32> to vector<16x128xf32>
    %14 = arith.addf %11, %13 : vector<16x128xf32>
    %cst_11 = arith.constant 0.000000e+00 : f32
    %15 = vector.broadcast %cst_11 : f32 to vector<16x128xf32>
    %16 = arith.maximumf %14, %15 : vector<16x128xf32>
    %17 = arith.truncf %16 : vector<16x128xf32> to vector<16x128xbf16>
    %c0_12 = arith.constant 0 : index
    %c0_13 = arith.constant 0 : index
    %18 = vector.load %arg6[%c0_12, %c0_13] : memref<128x128xbf16, #tpu.memory_space<vmem>>, vector<128x128xbf16>
    %cst_14 = arith.constant dense<0.000000e+00> : vector<16x128xf32>
    %19 = tpu.matmul %17, %18, %cst_14 {dimension_numbers = #tpu.dot_dimension_numbers<[1], [0], [0], [1], [0, 0, 1, 1], [], []>} : vector<16x128xbf16>, vector<128x128xbf16>, vector<16x128xf32> -> vector<16x128xf32>
    %c0_15 = arith.constant 0 : index
    %c0_16 = arith.constant 0 : index
    %20 = vector.load %arg7[%c0_15, %c0_16] : memref<1x128xf32, #tpu.memory_space<vmem>>, vector<1x128xf32>
    %21 = vector.broadcast %20 : vector<1x128xf32> to vector<16x128xf32>
    %22 = arith.addf %19, %21 : vector<16x128xf32>
    %cst_17 = arith.constant 0.000000e+00 : f32
    %23 = vector.broadcast %cst_17 : f32 to vector<16x128xf32>
    %24 = arith.maximumf %22, %23 : vector<16x128xf32>
    %25 = arith.truncf %24 : vector<16x128xf32> to vector<16x128xbf16>
    %c0_18 = arith.constant 0 : index
    %c0_19 = arith.constant 0 : index
    %26 = vector.load %arg8[%c0_18, %c0_19] : memref<128x128xbf16, #tpu.memory_space<vmem>>, vector<128x128xbf16>
    %cst_20 = arith.constant dense<0.000000e+00> : vector<16x128xf32>
    %27 = tpu.matmul %25, %26, %cst_20 {dimension_numbers = #tpu.dot_dimension_numbers<[1], [0], [0], [1], [0, 0, 1, 1], [], []>} : vector<16x128xbf16>, vector<128x128xbf16>, vector<16x128xf32> -> vector<16x128xf32>
    %c0_21 = arith.constant 0 : index
    %c0_22 = arith.constant 0 : index
    %28 = vector.load %arg9[%c0_21, %c0_22] : memref<1x128xf32, #tpu.memory_space<vmem>>, vector<1x128xf32>
    %29 = vector.broadcast %28 : vector<1x128xf32> to vector<16x128xf32>
    %30 = arith.addf %27, %29 : vector<16x128xf32>
    %cst_23 = arith.constant 0.000000e+00 : f32
    %31 = vector.broadcast %cst_23 : f32 to vector<16x128xf32>
    %32 = arith.maximumf %30, %31 : vector<16x128xf32>
    %33 = arith.truncf %32 : vector<16x128xf32> to vector<16x128xbf16>
    %c0_24 = arith.constant 0 : index
    %c0_25 = arith.constant 0 : index
    %34 = vector.load %arg10[%c0_24, %c0_25] : memref<128x128xbf16, #tpu.memory_space<vmem>>, vector<128x128xbf16>
    %cst_26 = arith.constant dense<0.000000e+00> : vector<16x128xf32>
    %35 = tpu.matmul %33, %34, %cst_26 {dimension_numbers = #tpu.dot_dimension_numbers<[1], [0], [0], [1], [0, 0, 1, 1], [], []>} : vector<16x128xbf16>, vector<128x128xbf16>, vector<16x128xf32> -> vector<16x128xf32>
    %c0_27 = arith.constant 0 : index
    %c0_28 = arith.constant 0 : index
    %36 = vector.load %arg11[%c0_27, %c0_28] : memref<1x128xf32, #tpu.memory_space<vmem>>, vector<1x128xf32>
    %37 = vector.broadcast %36 : vector<1x128xf32> to vector<16x128xf32>
    %38 = arith.addf %35, %37 : vector<16x128xf32>
    %c0_29 = arith.constant 0 : index
    %c0_30 = arith.constant 0 : index
    %39 = vector.load %arg12[%c0_29, %c0_30] : memref<16x128xf32, #tpu.memory_space<vmem>>, vector<16x128xf32>
    tpu.vector_store %arg12[%c0_29, %c0_30], %38 {strides = array<i32>} : memref<16x128xf32, #tpu.memory_space<vmem>>, vector<16x128xf32>,
    return
  }
  func.func @transform_0(%arg0: i32) -> (i32, i32) {
    %c0_i32 = arith.constant 0 : i32
    %c0_i32_0 = arith.constant 0 : i32
    return %arg0, %c0_i32 : i32, i32
  }
  func.func @transform_1(%arg0: i32) -> (i32, i32) {
    %c0_i32 = arith.constant 0 : i32
    %c0_i32_0 = arith.constant 0 : i32
    %c0_i32_1 = arith.constant 0 : i32
    return %c0_i32, %c0_i32_0 : i32, i32
  }
  func.func @transform_2(%arg0: i32) -> (i32, i32) {
    %c0_i32 = arith.constant 0 : i32
    %c0_i32_0 = arith.constant 0 : i32
    %c0_i32_1 = arith.constant 0 : i32
    return %c0_i32, %c0_i32_0 : i32, i32
  }
  func.func @transform_3(%arg0: i32) -> (i32, i32) {
    %c0_i32 = arith.constant 0 : i32
    %c0_i32_0 = arith.constant 0 : i32
    %c0_i32_1 = arith.constant 0 : i32
    return %c0_i32, %c0_i32_0 : i32, i32
  }
  func.func @transform_4(%arg0: i32) -> (i32, i32) {
    %c0_i32 = arith.constant 0 : i32
    %c0_i32_0 = arith.constant 0 : i32
    %c0_i32_1 = arith.constant 0 : i32
    return %c0_i32, %c0_i32_0 : i32, i32
  }
  func.func @transform_5(%arg0: i32) -> (i32, i32) {
    %c0_i32 = arith.constant 0 : i32
    %c0_i32_0 = arith.constant 0 : i32
    %c0_i32_1 = arith.constant 0 : i32
    return %c0_i32, %c0_i32_0 : i32, i32
  }
  func.func @transform_6(%arg0: i32) -> (i32, i32) {
    %c0_i32 = arith.constant 0 : i32
    %c0_i32_0 = arith.constant 0 : i32
    %c0_i32_1 = arith.constant 0 : i32
    return %c0_i32, %c0_i32_0 : i32, i32
  }
  func.func @transform_7(%arg0: i32) -> (i32, i32) {
    %c0_i32 = arith.constant 0 : i32
    %c0_i32_0 = arith.constant 0 : i32
    %c0_i32_1 = arith.constant 0 : i32
    return %c0_i32, %c0_i32_0 : i32, i32
  }
  func.func @transform_8(%arg0: i32) -> (i32, i32) {
    %c0_i32 = arith.constant 0 : i32
    %c0_i32_0 = arith.constant 0 : i32
    %c0_i32_1 = arith.constant 0 : i32
    return %c0_i32, %c0_i32_0 : i32, i32
  }
  func.func @transform_9(%arg0: i32) -> (i32, i32) {
    %c0_i32 = arith.constant 0 : i32
    %c0_i32_0 = arith.constant 0 : i32
    %c0_i32_1 = arith.constant 0 : i32
    return %c0_i32, %c0_i32_0 : i32, i32
  }
  func.func @transform_10(%arg0: i32) -> (i32, i32) {
    %c0_i32 = arith.constant 0 : i32
    %c0_i32_0 = arith.constant 0 : i32
    %c0_i32_1 = arith.constant 0 : i32
    return %c0_i32, %c0_i32_0 : i32, i32
  }
  func.func @transform_11(%arg0: i32) -> (i32, i32) {
    %c0_i32 = arith.constant 0 : i32
    %c0_i32_0 = arith.constant 0 : i32
    return %arg0, %c0_i32 : i32, i32
  }
}

module attributes {stable_mosaic.version = 11 : i64} {
  func.func @_fc_kernel(%arg0: i32, %arg1: memref<16x256xf32, #tpu.memory_space<vmem>>, %arg2: memref<256x128xbf16, #tpu.memory_space<vmem>>, %arg3: memref<1x128xf32, #tpu.memory_space<vmem>>, %arg4: memref<128x128xbf16, #tpu.memory_space<vmem>>, %arg5: memref<1x128xf32, #tpu.memory_space<vmem>>, %arg6: memref<128x128xbf16, #tpu.memory_space<vmem>>, %arg7: memref<1x128xf32, #tpu.memory_space<vmem>>, %arg8: memref<128x128xbf16, #tpu.memory_space<vmem>>, %arg9: memref<1x128xf32, #tpu.memory_space<vmem>>, %arg10: memref<128x128xbf16, #tpu.memory_space<vmem>>, %arg11: memref<1x128xf32, #tpu.memory_space<vmem>>, %arg12: memref<16x128xf32, #tpu.memory_space<vmem>>) attributes {dimension_semantics = [#tpu.dimension_semantics<parallel>], iteration_bounds = array<i64: 1>, scalar_prefetch = 0 : i64, scratch_operands = 0 : i64, tpu.core_type = #tpu.core_type<tc>, window_params = [{transform_indices = @transform_0, window_bounds = array<i64: 16, 256>}, {pipeline_mode = #tpu.pipeline_mode<synchronous>, transform_indices = @transform_1, window_bounds = array<i64: 256, 128>}, {pipeline_mode = #tpu.pipeline_mode<synchronous>, transform_indices = @transform_2, window_bounds = array<i64: 1, 128>}, {pipeline_mode = #tpu.pipeline_mode<synchronous>, transform_indices = @transform_3, window_bounds = array<i64: 128, 128>}, {pipeline_mode = #tpu.pipeline_mode<synchronous>, transform_indices = @transform_4, window_bounds = array<i64: 1, 128>}, {pipeline_mode = #tpu.pipeline_mode<synchronous>, transform_indices = @transform_5, window_bounds = array<i64: 128, 128>}, {pipeline_mode = #tpu.pipeline_mode<synchronous>, transform_indices = @transform_6, window_bounds = array<i64: 1, 128>}, {pipeline_mode = #tpu.pipeline_mode<synchronous>, transform_indices = @transform_7, window_bounds = array<i64: 128, 128>}, {pipeline_mode = #tpu.pipeline_mode<synchronous>, transform_indices = @transform_8, window_bounds = array<i64: 1, 128>}, {pipeline_mode = #tpu.pipeline_mode<synchronous>, transform_indices = @transform_9, window_bounds = array<i64: 128, 128>}, {pipeline_mode = #tpu.pipeline_mode<synchronous>, transform_indices = @transform_10, window_bounds = array<i64: 1, 128>}, {transform_indices = @transform_11, window_bounds = array<i64: 16, 128>}]} {
    %c0 = arith.constant 0 : index
    %c0_0 = arith.constant 0 : index
    %0 = vector.load %arg1[%c0, %c0_0] : memref<16x256xf32, #tpu.memory_space<vmem>>, vector<16x256xf32>
    %1 = arith.truncf %0 : vector<16x256xf32> to vector<16x256xbf16>
    %c0_1 = arith.constant 0 : index
    %c0_2 = arith.constant 0 : index
    %2 = vector.load %arg2[%c0_1, %c0_2] : memref<256x128xbf16, #tpu.memory_space<vmem>>, vector<256x128xbf16>
    %cst = arith.constant dense<0.000000e+00> : vector<16x128xf32>
    %3 = tpu.matmul %1, %2, %cst {dimension_numbers = #tpu.dot_dimension_numbers<[1], [0], [0], [1], [0, 0, 1, 1], [], []>} : vector<16x256xbf16>, vector<256x128xbf16>, vector<16x128xf32> -> vector<16x128xf32>
    %c0_3 = arith.constant 0 : index
    %c0_4 = arith.constant 0 : index
    %4 = vector.load %arg3[%c0_3, %c0_4] : memref<1x128xf32, #tpu.memory_space<vmem>>, vector<1x128xf32>
    %5 = vector.broadcast %4 : vector<1x128xf32> to vector<16x128xf32>
    %6 = arith.addf %3, %5 : vector<16x128xf32>
    %cst_5 = arith.constant 0.000000e+00 : f32
    %7 = vector.broadcast %cst_5 : f32 to vector<16x128xf32>
    %8 = arith.maximumf %6, %7 : vector<16x128xf32>
    %9 = arith.truncf %8 : vector<16x128xf32> to vector<16x128xbf16>
    %c0_6 = arith.constant 0 : index
    %c0_7 = arith.constant 0 : index
    %10 = vector.load %arg4[%c0_6, %c0_7] : memref<128x128xbf16, #tpu.memory_space<vmem>>, vector<128x128xbf16>
    %cst_8 = arith.constant dense<0.000000e+00> : vector<16x128xf32>
    %11 = tpu.matmul %9, %10, %cst_8 {dimension_numbers = #tpu.dot_dimension_numbers<[1], [0], [0], [1], [0, 0, 1, 1], [], []>} : vector<16x128xbf16>, vector<128x128xbf16>, vector<16x128xf32> -> vector<16x128xf32>
    %c0_9 = arith.constant 0 : index
    %c0_10 = arith.constant 0 : index
    %12 = vector.load %arg5[%c0_9, %c0_10] : memref<1x128xf32, #tpu.memory_space<vmem>>, vector<1x128xf32>
    %13 = vector.broadcast %12 : vector<1x128xf32> to vector<16x128xf32>
    %14 = arith.addf %11, %13 : vector<16x128xf32>
    %cst_11 = arith.constant 0.000000e+00 : f32
    %15 = vector.broadcast %cst_11 : f32 to vector<16x128xf32>
    %16 = arith.maximumf %14, %15 : vector<16x128xf32>
    %17 = arith.truncf %16 : vector<16x128xf32> to vector<16x128xbf16>
    %c0_12 = arith.constant 0 : index
    %c0_13 = arith.constant 0 : index
    %18 = vector.load %arg6[%c0_12, %c0_13] : memref<128x128xbf16, #tpu.memory_space<vmem>>, vector<128x128xbf16>
    %cst_14 = arith.constant dense<0.000000e+00> : vector<16x128xf32>
    %19 = tpu.matmul %17, %18, %cst_14 {dimension_numbers = #tpu.dot_dimension_numbers<[1], [0], [0], [1], [0, 0, 1, 1], [], []>} : vector<16x128xbf16>, vector<128x128xbf16>, vector<16x128xf32> -> vector<16x128xf32>
    %c0_15 = arith.constant 0 : index
    %c0_16 = arith.constant 0 : index
    %20 = vector.load %arg7[%c0_15, %c0_16] : memref<1x128xf32, #tpu.memory_space<vmem>>, vector<1x128xf32>
    %21 = vector.broadcast %20 : vector<1x128xf32> to vector<16x128xf32>
    %22 = arith.addf %19, %21 : vector<16x128xf32>
    %cst_17 = arith.constant 0.000000e+00 : f32
    %23 = vector.broadcast %cst_17 : f32 to vector<16x128xf32>
    %24 = arith.maximumf %22, %23 : vector<16x128xf32>
    %25 = arith.truncf %24 : vector<16x128xf32> to vector<16x128xbf16>
    %c0_18 = arith.constant 0 : index
    %c0_19 = arith.constant 0 : index
    %26 = vector.load %arg8[%c0_18, %c0_19] : memref<128x128xbf16, #tpu.memory_space<vmem>>, vector<128x128xbf16>
    %cst_20 = arith.constant dense<0.000000e+00> : vector<16x128xf32>
    %27 = tpu.matmul %25, %26, %cst_20 {dimension_numbers = #tpu.dot_dimension_numbers<[1], [0], [0], [1], [0, 0, 1, 1], [], []>} : vector<16x128xbf16>, vector<128x128xbf16>, vector<16x128xf32> -> vector<16x128xf32>
    %c0_21 = arith.constant 0 : index
    %c0_22 = arith.constant 0 : index
    %28 = vector.load %arg9[%c0_21, %c0_22] : memref<1x128xf32, #tpu.memory_space<vmem>>, vector<1x128xf32>
    %29 = vector.broadcast %28 : vector<1x128xf32> to vector<16x128xf32>
    %30 = arith.addf %27, %29 : vector<16x128xf32>
    %cst_23 = arith.constant 0.000000e+00 : f32
    %31 = vector.broadcast %cst_23 : f32 to vector<16x128xf32>
    %32 = arith.maximumf %30, %31 : vector<16x128xf32>
    %33 = arith.truncf %32 : vector<16x128xf32> to vector<16x128xbf16>
    %c0_24 = arith.constant 0 : index
    %c0_25 = arith.constant 0 : index
    %34 = vector.load %arg10[%c0_24, %c0_25] : memref<128x128xbf16, #tpu.memory_space<vmem>>, vector<128x128xbf16>
    %cst_26 = arith.constant dense<0.000000e+00> : vector<16x128xf32>
    %35 = tpu.matmul %33, %34, %cst_26 {dimension_numbers = #tpu.dot_dimension_numbers<[1], [0], [0], [1], [0, 0, 1, 1], [], []>} : vector<16x128xbf16>, vector<128x128xbf16>, vector<16x128xf32> -> vector<16x128xf32>
    %c0_27 = arith.constant 0 : index
    %c0_28 = arith.constant 0 : index
    %36 = vector.load %arg11[%c0_27, %c0_28] : memref<1x128xf32, #tpu.memory_space<vmem>>, vector<1x128xf32>
    %37 = vector.broadcast %36 : vector<1x128xf32> to vector<16x128xf32>
    %38 = arith.addf %35, %37 : vector<16x128xf32>
    %c0_29 = arith.constant 0 : index
    %c0_30 = arith.constant 0 : index
    %39 = vector.load %arg12[%c0_29, %c0_30] : memref<16x128xf32, #tpu.memory_space<vmem>>, vector<16x128xf32>
    tpu.vector_store %arg12[%c0_29, %c0_30], %38 {strides = array<i32>} : memref<16x128xf32, #tpu.memory_space<vmem>>, vector<16x128xf32>,
    return
  }
  func.func @transform_0(%arg0: i32) -> (i32, i32) {
    %c0_i32 = arith.constant 0 : i32
    %c0_i32_0 = arith.constant 0 : i32
    return %arg0, %c0_i32 : i32, i32
  }
  func.func @transform_1(%arg0: i32) -> (i32, i32) {
    %c0_i32 = arith.constant 0 : i32
    %c0_i32_0 = arith.constant 0 : i32
    %c0_i32_1 = arith.constant 0 : i32
    return %c0_i32, %c0_i32_0 : i32, i32
  }
  func.func @transform_2(%arg0: i32) -> (i32, i32) {
    %c0_i32 = arith.constant 0 : i32
    %c0_i32_0 = arith.constant 0 : i32
    %c0_i32_1 = arith.constant 0 : i32
    return %c0_i32, %c0_i32_0 : i32, i32
  }
  func.func @transform_3(%arg0: i32) -> (i32, i32) {
    %c0_i32 = arith.constant 0 : i32
    %c0_i32_0 = arith.constant 0 : i32
    %c0_i32_1 = arith.constant 0 : i32
    return %c0_i32, %c0_i32_0 : i32, i32
  }
  func.func @transform_4(%arg0: i32) -> (i32, i32) {
    %c0_i32 = arith.constant 0 : i32
    %c0_i32_0 = arith.constant 0 : i32
    %c0_i32_1 = arith.constant 0 : i32
    return %c0_i32, %c0_i32_0 : i32, i32
  }
  func.func @transform_5(%arg0: i32) -> (i32, i32) {
    %c0_i32 = arith.constant 0 : i32
    %c0_i32_0 = arith.constant 0 : i32
    %c0_i32_1 = arith.constant 0 : i32
    return %c0_i32, %c0_i32_0 : i32, i32
  }
  func.func @transform_6(%arg0: i32) -> (i32, i32) {
    %c0_i32 = arith.constant 0 : i32
    %c0_i32_0 = arith.constant 0 : i32
    %c0_i32_1 = arith.constant 0 : i32
    return %c0_i32, %c0_i32_0 : i32, i32
  }
  func.func @transform_7(%arg0: i32) -> (i32, i32) {
    %c0_i32 = arith.constant 0 : i32
    %c0_i32_0 = arith.constant 0 : i32
    %c0_i32_1 = arith.constant 0 : i32
    return %c0_i32, %c0_i32_0 : i32, i32
  }
  func.func @transform_8(%arg0: i32) -> (i32, i32) {
    %c0_i32 = arith.constant 0 : i32
    %c0_i32_0 = arith.constant 0 : i32
    %c0_i32_1 = arith.constant 0 : i32
    return %c0_i32, %c0_i32_0 : i32, i32
  }
  func.func @transform_9(%arg0: i32) -> (i32, i32) {
    %c0_i32 = arith.constant 0 : i32
    %c0_i32_0 = arith.constant 0 : i32
    %c0_i32_1 = arith.constant 0 : i32
    return %c0_i32, %c0_i32_0 : i32, i32
  }
  func.func @transform_10(%arg0: i32) -> (i32, i32) {
    %c0_i32 = arith.constant 0 : i32
    %c0_i32_0 = arith.constant 0 : i32
    %c0_i32_1 = arith.constant 0 : i32
    return %c0_i32, %c0_i32_0 : i32, i32
  }
  func.func @transform_11(%arg0: i32) -> (i32, i32) {
    %c0_i32 = arith.constant 0 : i32
    %c0_i32_0 = arith.constant 0 : i32
    return %arg0, %c0_i32 : i32, i32
  }
}

</mosaic_0001>

<llo_original>
// kernel: _fc_forward.1
$region0: #{_fc_forward.1}
  #allocation0 [shape = 'u32[]', space=smem, size = 0x4, offset = 0x4, fixed_abs, tag = 'smem constant byte address 0x4 - core index']
  #allocation1 [shape = 'u32[72,128]{1,0:T(1,128)}', space=vmem, size = 0x9000, scoped, tag = 'internal scratch']
  %s0 = inlined_call_operand.vmem [shape: f32[16,256], index: 0, kind: input, shape index: {}]
  %s1 = inlined_call_operand.hbm [shape: bf16[256,128], index: 1, kind: input, shape index: {}]
  %s2 = inlined_call_operand.vmem [shape: f32[1,128], index: 2, kind: input, shape index: {}]
  %s3 = inlined_call_operand.vmem [shape: bf16[128,128], index: 3, kind: input, shape index: {}]
  %s4 = inlined_call_operand.vmem [shape: f32[1,128], index: 4, kind: input, shape index: {}]
  %s5 = inlined_call_operand.hbm [shape: bf16[128,128], index: 5, kind: input, shape index: {}]
  %s6 = inlined_call_operand.vmem [shape: f32[1,128], index: 6, kind: input, shape index: {}]
  %s7 = inlined_call_operand.hbm [shape: bf16[128,128], index: 7, kind: input, shape index: {}]
  %s8 = inlined_call_operand.vmem [shape: f32[1,128], index: 8, kind: input, shape index: {}]
  %s9 = inlined_call_operand.hbm [shape: bf16[128,128], index: 9, kind: input, shape index: {}]
  %s10 = inlined_call_operand.vmem [shape: f32[1,128], index: 10, kind: input, shape index: {}]
  %s11 = inlined_call_operand.vmem [shape: f32[16,128], index: 11, kind: output, shape index: {}]
  %s12 = sld [smem:[#allocation0]]
  $region70: #{_fc_forward.1} parent=0
    _
  %s14 = ssub.s32 1, %s12
  %s15 = scalar_select 0, %s14, %s12
  $region1: #{_fc_forward.1} parent=0
    #allocation2 [shape = 'u8[65536]{0}', space=vmem, size = 0x10000, scoped, tag = 'input window, operand 1, single buffered']
    #allocation3 [shape = 's32[1]{0}', space=sflag, size = 0x4, scoped, tag = 'scoped memory for _fc_forward.1']
    #allocation4 [shape = 'u8[32768]{0}', space=vmem, size = 0x8000, scoped, tag = 'input window, operand 5, single buffered']
    #allocation5 [shape = 's32[1]{0}', space=sflag, size = 0x4, scoped, tag = 'scoped memory for _fc_forward.1']
    #allocation6 [shape = 'u8[32768]{0}', space=vmem, size = 0x8000, scoped, tag = 'input window, operand 7, single buffered']
    #allocation7 [shape = 'u8[32768]{0}', space=vmem, size = 0x8000, scoped, tag = 'input window, operand 9, single buffered']
    #allocation8 [shape = 's32[1]{0}', space=sflag, size = 0x4, scoped, tag = 'scoped memory for _fc_forward.1']
    %16 = vsyncpa [#allocation3], 0
    %17 = vsyncpa [#allocation5], 0
    %18 = vsyncpa [#allocation8], 0
    // Predicated region
    $region2: #{_fc_forward.1} parent=1 // pred_check
      _
    $region3: #{_fc_forward.1} parent=1 // pred_check_branch
      %20 = sbr.rel (0) target = $region5
    $region4: #{_fc_forward.1} parent=1 // pred_region
      _
    $region5: #{_fc_forward.1} parent=1 // pred_fallthru
      _
    // Predicated region
    $region6: #{_fc_forward.1} parent=1 // pred_check
      _
    $region7: #{_fc_forward.1} parent=1 // pred_check_branch
      %22 = sbr.rel (0) target = $region9
    $region8: #{_fc_forward.1} parent=1 // pred_region
      %24 = vsyncadd [#allocation3], 0
      %s25 = sshll.u32 %s1, 4
      %s26 = int_to_ptr.hbm [resolvable:$true] %s25
      %s27 = sshll.u32 [#allocation2], 4
      %s28 = int_to_ptr.vmem [resolvable:$true] %s27
      %33 = dma.hbm_to_vmem [thread:$0]  %s26, 2048, %s28, [#allocation3], 64, 64, 4
    $region9: #{_fc_forward.1} parent=1 // pred_fallthru
      _
    // Predicated region
    $region10: #{_fc_forward.1} parent=1 // pred_check
      _
    $region11: #{_fc_forward.1} parent=1 // pred_check_branch
      %35 = sbr.rel (0) target = $region13
    $region12: #{_fc_forward.1} parent=1 // pred_region
      _
    $region13: #{_fc_forward.1} parent=1 // pred_fallthru
      _
    // Predicated region
    $region14: #{_fc_forward.1} parent=1 // pred_check
      _
    $region15: #{_fc_forward.1} parent=1 // pred_check_branch
      %37 = sbr.rel (0) target = $region17
    $region16: #{_fc_forward.1} parent=1 // pred_region
      _
    $region17: #{_fc_forward.1} parent=1 // pred_fallthru
      _
    // Predicated region
    $region18: #{_fc_forward.1} parent=1 // pred_check
      _
    $region19: #{_fc_forward.1} parent=1 // pred_check_branch
      %39 = sbr.rel (0) target = $region21
    $region20: #{_fc_forward.1} parent=1 // pred_region
      _
    $region21: #{_fc_forward.1} parent=1 // pred_fallthru
      _
    // Predicated region
    $region22: #{_fc_forward.1} parent=1 // pred_check
      _
    $region23: #{_fc_forward.1} parent=1 // pred_check_branch
      %41 = sbr.rel (0) target = $region25
    $region24: #{_fc_forward.1} parent=1 // pred_region
      %43 = vsyncadd [#allocation5], 0
      %s44 = sshll.u32 %s5, 4
      %s45 = int_to_ptr.hbm [resolvable:$true] %s44
      %s46 = sshll.u32 [#allocation4], 4
      %s47 = int_to_ptr.vmem [resolvable:$true] %s46
      %52 = dma.hbm_to_vmem [thread:$0]  %s45, 1024, %s47, [#allocation5], 64, 64, 4
    $region25: #{_fc_forward.1} parent=1 // pred_fallthru
      _
    // Predicated region
    $region26: #{_fc_forward.1} parent=1 // pred_check
      _
    $region27: #{_fc_forward.1} parent=1 // pred_check_branch
      %54 = sbr.rel (0) target = $region29
    $region28: #{_fc_forward.1} parent=1 // pred_region
      _
    $region29: #{_fc_forward.1} parent=1 // pred_fallthru
      _
    // Predicated region
    $region30: #{_fc_forward.1} parent=1 // pred_check
      _
    $region31: #{_fc_forward.1} parent=1 // pred_check_branch
      %56 = sbr.rel (0) target = $region33
    $region32: #{_fc_forward.1} parent=1 // pred_region
      %58 = vsyncadd [#allocation5], 0
      %s59 = sshll.u32 %s7, 4
      %s60 = int_to_ptr.hbm [resolvable:$true] %s59
      %s61 = sshll.u32 [#allocation6], 4
      %s62 = int_to_ptr.vmem [resolvable:$true] %s61
      %67 = dma.hbm_to_vmem [thread:$0]  %s60, 1024, %s62, [#allocation5], 64, 64, 4
    $region33: #{_fc_forward.1} parent=1 // pred_fallthru
      _
    // Predicated region
    $region34: #{_fc_forward.1} parent=1 // pred_check
      _
    $region35: #{_fc_forward.1} parent=1 // pred_check_branch
      %69 = sbr.rel (0) target = $region37
    $region36: #{_fc_forward.1} parent=1 // pred_region
      _
    $region37: #{_fc_forward.1} parent=1 // pred_fallthru
      _
    // Predicated region
    $region38: #{_fc_forward.1} parent=1 // pred_check
      _
    $region39: #{_fc_forward.1} parent=1 // pred_check_branch
      %71 = sbr.rel (0) target = $region41
    $region40: #{_fc_forward.1} parent=1 // pred_region
      %73 = vsyncadd [#allocation8], 0
      %s74 = sshll.u32 %s9, 4
      %s75 = int_to_ptr.hbm [resolvable:$true] %s74
      %s76 = sshll.u32 [#allocation7], 4
      %s77 = int_to_ptr.vmem [resolvable:$true] %s76
      %82 = dma.hbm_to_vmem [thread:$0]  %s75, 1024, %s77, [#allocation8], 64, 64, 4
    $region41: #{_fc_forward.1} parent=1 // pred_fallthru
      _
    // Predicated region
    $region42: #{_fc_forward.1} parent=1 // pred_check
      _
    $region43: #{_fc_forward.1} parent=1 // pred_check_branch
      %84 = sbr.rel (0) target = $region45
    $region44: #{_fc_forward.1} parent=1 // pred_region
      _
    $region45: #{_fc_forward.1} parent=1 // pred_fallthru
      _
    // Predicated region
    $region46: #{_fc_forward.1} parent=1 // pred_check
      _
    $region47: #{_fc_forward.1} parent=1 // pred_check_branch
      %86 = sbr.rel (0) target = $region49
    $region48: #{_fc_forward.1} parent=1 // pred_region
      %88 = dma.done [#allocation3], 2048
    $region49: #{_fc_forward.1} parent=1 // pred_fallthru
      _
    // Predicated region
    $region50: #{_fc_forward.1} parent=1 // pred_check
      _
    $region51: #{_fc_forward.1} parent=1 // pred_check_branch
      %90 = sbr.rel (0) target = $region53
    $region52: #{_fc_forward.1} parent=1 // pred_region
      %92 = dma.done [#allocation5], 1024
    $region53: #{_fc_forward.1} parent=1 // pred_fallthru
      _
    // Predicated region
    $region54: #{_fc_forward.1} parent=1 // pred_check
      _
    $region55: #{_fc_forward.1} parent=1 // pred_check_branch
      %94 = sbr.rel (0) target = $region57
    $region56: #{_fc_forward.1} parent=1 // pred_region
      %96 = dma.done [#allocation5], 1024
    $region57: #{_fc_forward.1} parent=1 // pred_fallthru
      _
    // Predicated region
    $region58: #{_fc_forward.1} parent=1 // pred_check
      _
    $region59: #{_fc_forward.1} parent=1 // pred_check_branch
      %98 = sbr.rel (0) target = $region61
    $region60: #{_fc_forward.1} parent=1 // pred_region
      %100 = dma.done [#allocation8], 1024
    $region61: #{_fc_forward.1} parent=1 // pred_fallthru
      _
    %v101 = vld [vmem:[%s0] sm:$0xff]
    %v102 = vld [vmem:[%s0 + $0x8] sm:$0xff]
    %v103 = vld [vmem:[%s0 + $0x10] sm:$0xff]
    %v104 = vld [vmem:[%s0 + $0x18] sm:$0xff]
    %v105 = vpack.c.bf16 %v103, %v101
    %v106 = vpack.c.bf16 %v104, %v102
    %v107 = vld [vmem:[#allocation2] sm:$0xf]
    %v108 = vld [vmem:[#allocation2 + $0x4] sm:$0xf]
    %v109 = vld [vmem:[#allocation2 + $0x8] sm:$0xf]
    %v110 = vld [vmem:[#allocation2 + $0xc] sm:$0xf]
    %v111 = vld [vmem:[#allocation2 + $0x10] sm:$0xf]
    %v112 = vld [vmem:[#allocation2 + $0x14] sm:$0xf]
    %v113 = vld [vmem:[#allocation2 + $0x18] sm:$0xf]
    %v114 = vld [vmem:[#allocation2 + $0x1c] sm:$0xf]
    %v115 = vld [vmem:[#allocation2 + $0x20] sm:$0xf]
    %v116 = vld [vmem:[#allocation2 + $0x24] sm:$0xf]
    %v117 = vld [vmem:[#allocation2 + $0x28] sm:$0xf]
    %v118 = vld [vmem:[#allocation2 + $0x2c] sm:$0xf]
    %v119 = vld [vmem:[#allocation2 + $0x30] sm:$0xf]
    %v120 = vld [vmem:[#allocation2 + $0x34] sm:$0xf]
    %v121 = vld [vmem:[#allocation2 + $0x38] sm:$0xf]
    %v122 = vld [vmem:[#allocation2 + $0x3c] sm:$0xf]
    %v123 = vld [vmem:[#allocation2 + $0x40] sm:$0xf]
    %v124 = vld [vmem:[#allocation2 + $0x44] sm:$0xf]
    %v125 = vld [vmem:[#allocation2 + $0x48] sm:$0xf]
    %v126 = vld [vmem:[#allocation2 + $0x4c] sm:$0xf]
    %v127 = vld [vmem:[#allocation2 + $0x50] sm:$0xf]
    %v128 = vld [vmem:[#allocation2 + $0x54] sm:$0xf]
    %v129 = vld [vmem:[#allocation2 + $0x58] sm:$0xf]
    %v130 = vld [vmem:[#allocation2 + $0x5c] sm:$0xf]
    %v131 = vld [vmem:[#allocation2 + $0x60] sm:$0xf]
    %v132 = vld [vmem:[#allocation2 + $0x64] sm:$0xf]
    %v133 = vld [vmem:[#allocation2 + $0x68] sm:$0xf]
    %v134 = vld [vmem:[#allocation2 + $0x6c] sm:$0xf]
    %v135 = vld [vmem:[#allocation2 + $0x70] sm:$0xf]
    %v136 = vld [vmem:[#allocation2 + $0x74] sm:$0xf]
    %v137 = vld [vmem:[#allocation2 + $0x78] sm:$0xf]
    %v138 = vld [vmem:[#allocation2 + $0x7c] sm:$0xf]
    %v139 = vld [vmem:[%s2] sm:$0x1]
    %v141 = vperm.slane %v139, 0
    %v175 = vunpack.c.l.b16 %v107
    %v176 = vunpack.c.l.b16 %v108
    %v177 = vunpack.c.l.b16 %v109
    %v178 = vunpack.c.l.b16 %v110
    %v179 = vunpack.c.l.b16 %v111
    %v180 = vunpack.c.l.b16 %v112
    %v181 = vunpack.c.l.b16 %v113
    %v182 = vunpack.c.l.b16 %v114
    %v183 = vunpack.c.l.b16 %v115
    %v184 = vunpack.c.l.b16 %v116
    %v185 = vunpack.c.l.b16 %v117
    %v186 = vunpack.c.l.b16 %v118
    %v187 = vunpack.c.l.b16 %v119
    %v188 = vunpack.c.l.b16 %v120
    %v189 = vunpack.c.l.b16 %v121
    %v190 = vunpack.c.l.b16 %v122
    %v191 = vunpack.c.l.b16 %v123
    %v192 = vunpack.c.l.b16 %v124
    %v193 = vunpack.c.l.b16 %v125
    %v194 = vunpack.c.l.b16 %v126
    %v195 = vunpack.c.l.b16 %v127
    %v196 = vunpack.c.l.b16 %v128
    %v197 = vunpack.c.l.b16 %v129
    %v198 = vunpack.c.l.b16 %v130
    %v199 = vunpack.c.l.b16 %v131
    %v200 = vunpack.c.l.b16 %v132
    %v201 = vunpack.c.l.b16 %v133
    %v202 = vunpack.c.l.b16 %v134
    %v203 = vunpack.c.l.b16 %v135
    %v204 = vunpack.c.l.b16 %v136
    %v205 = vunpack.c.l.b16 %v137
    %v206 = vunpack.c.l.b16 %v138
    %v207 = vpack.c.b16 %v176, %v175
    %v208 = vpack.c.b16 %v178, %v177
    %v209 = vpack.c.b16 %v180, %v179
    %v210 = vpack.c.b16 %v182, %v181
    %v211 = vpack.c.b16 %v184, %v183
    %v212 = vpack.c.b16 %v186, %v185
    %v213 = vpack.c.b16 %v188, %v187
    %v214 = vpack.c.b16 %v190, %v189
    %v215 = vpack.c.b16 %v192, %v191
    %v216 = vpack.c.b16 %v194, %v193
    %v217 = vpack.c.b16 %v196, %v195
    %v218 = vpack.c.b16 %v198, %v197
    %v219 = vpack.c.b16 %v200, %v199
    %v220 = vpack.c.b16 %v202, %v201
    %v221 = vpack.c.b16 %v204, %v203
    %v222 = vpack.c.b16 %v206, %v205
    %239 = vmatpush.bf16.msra.mxu0 %v214
    %240 = vmatpush.bf16.msra.mxu0 %v213
    %241 = vmatpush.bf16.msra.mxu0 %v212
    %242 = vmatpush.bf16.msra.mxu0 %v211
    %243 = vmatpush.bf16.msra.mxu0 %v210
    %244 = vmatpush.bf16.msra.mxu0 %v209
    %245 = vmatpush.bf16.msra.mxu0 %v208
    %246 = vmatpush.bf16.msra.mxu0 %v207
    %247 = vmatmul.bf16.gmra.mxu0 %v105
    %v248 = vpop.f32.mrf.mxu0
    %v249 = vadd.f32 %v141, %v248
    %v250 = vpop.f32.mrf.mxu0
    %v251 = vadd.f32 %v141, %v250
    %252 = vdwg.mxu0
    %253 = vmatpush.bf16.msra.mxu0 %v222
    %254 = vmatpush.bf16.msra.mxu0 %v221
    %255 = vmatpush.bf16.msra.mxu0 %v220
    %256 = vmatpush.bf16.msra.mxu0 %v219
    %257 = vmatpush.bf16.msra.mxu0 %v218
    %258 = vmatpush.bf16.msra.mxu0 %v217
    %259 = vmatpush.bf16.msra.mxu0 %v216
    %260 = vmatpush.bf16.msra.mxu0 %v215
    %261 = vmatmul.bf16.gmra.mxu0 %v106
    %v262 = vpop.f32.mrf.mxu0
    %v263 = vadd.f32 %v249, %v262
    %v264 = vpop.f32.mrf.mxu0
    %v265 = vadd.f32 %v251, %v264
    %266 = vdwg.mxu0
    %v267 = vmax.f32 %v263, 0.0
    %v268 = vmax.f32 %v265, 0.0
    %v269 = vpack.c.bf16 %v268, %v267
    %v270 = vld [vmem:[%s3] sm:$0xf]
    %v271 = vld [vmem:[%s3 + $0x4] sm:$0xf]
    %v272 = vld [vmem:[%s3 + $0x8] sm:$0xf]
    %v273 = vld [vmem:[%s3 + $0xc] sm:$0xf]
    %v274 = vld [vmem:[%s3 + $0x10] sm:$0xf]
    %v275 = vld [vmem:[%s3 + $0x14] sm:$0xf]
    %v276 = vld [vmem:[%s3 + $0x18] sm:$0xf]
    %v277 = vld [vmem:[%s3 + $0x1c] sm:$0xf]
    %v278 = vld [vmem:[%s3 + $0x20] sm:$0xf]
    %v279 = vld [vmem:[%s3 + $0x24] sm:$0xf]
    %v280 = vld [vmem:[%s3 + $0x28] sm:$0xf]
    %v281 = vld [vmem:[%s3 + $0x2c] sm:$0xf]
    %v282 = vld [vmem:[%s3 + $0x30] sm:$0xf]
    %v283 = vld [vmem:[%s3 + $0x34] sm:$0xf]
    %v284 = vld [vmem:[%s3 + $0x38] sm:$0xf]
    %v285 = vld [vmem:[%s3 + $0x3c] sm:$0xf]
    %v286 = vld [vmem:[%s4] sm:$0x1]
    %v288 = vperm.slane %v286, 0
    %v306 = vunpack.c.l.b16 %v270
    %v307 = vunpack.c.l.b16 %v271
    %v308 = vunpack.c.l.b16 %v272
    %v309 = vunpack.c.l.b16 %v273
    %v310 = vunpack.c.l.b16 %v274
    %v311 = vunpack.c.l.b16 %v275
    %v312 = vunpack.c.l.b16 %v276
    %v313 = vunpack.c.l.b16 %v277
    %v314 = vunpack.c.l.b16 %v278
    %v315 = vunpack.c.l.b16 %v279
    %v316 = vunpack.c.l.b16 %v280
    %v317 = vunpack.c.l.b16 %v281
    %v318 = vunpack.c.l.b16 %v282
    %v319 = vunpack.c.l.b16 %v283
    %v320 = vunpack.c.l.b16 %v284
    %v321 = vunpack.c.l.b16 %v285
    %v322 = vpack.c.b16 %v307, %v306
    %v323 = vpack.c.b16 %v309, %v308
    %v324 = vpack.c.b16 %v311, %v310
    %v325 = vpack.c.b16 %v313, %v312
    %v326 = vpack.c.b16 %v315, %v314
    %v327 = vpack.c.b16 %v317, %v316
    %v328 = vpack.c.b16 %v319, %v318
    %v329 = vpack.c.b16 %v321, %v320
    %338 = vmatpush.bf16.msra.mxu0 %v329
    %339 = vmatpush.bf16.msra.mxu0 %v328
    %340 = vmatpush.bf16.msra.mxu0 %v327
    %341 = vmatpush.bf16.msra.mxu0 %v326
    %342 = vmatpush.bf16.msra.mxu0 %v325
    %343 = vmatpush.bf16.msra.mxu0 %v324
    %344 = vmatpush.bf16.msra.mxu0 %v323
    %345 = vmatpush.bf16.msra.mxu0 %v322
    %346 = vmatmul.bf16.gmra.mxu0 %v269
    %v347 = vpop.f32.mrf.mxu0
    %v348 = vadd.f32 %v288, %v347
    %v349 = vpop.f32.mrf.mxu0
    %v350 = vadd.f32 %v288, %v349
    %351 = vdwg.mxu0
    %v352 = vmax.f32 %v348, 0.0
    %v353 = vmax.f32 %v350, 0.0
    %v354 = vpack.c.bf16 %v353, %v352
    %v355 = vld [vmem:[#allocation4] sm:$0xf]
    %v356 = vld [vmem:[#allocation4 + $0x4] sm:$0xf]
    %v357 = vld [vmem:[#allocation4 + $0x8] sm:$0xf]
    %v358 = vld [vmem:[#allocation4 + $0xc] sm:$0xf]
    %v359 = vld [vmem:[#allocation4 + $0x10] sm:$0xf]
    %v360 = vld [vmem:[#allocation4 + $0x14] sm:$0xf]
    %v361 = vld [vmem:[#allocation4 + $0x18] sm:$0xf]
    %v362 = vld [vmem:[#allocation4 + $0x1c] sm:$0xf]
    %v363 = vld [vmem:[#allocation4 + $0x20] sm:$0xf]
    %v364 = vld [vmem:[#allocation4 + $0x24] sm:$0xf]
    %v365 = vld [vmem:[#allocation4 + $0x28] sm:$0xf]
    %v366 = vld [vmem:[#allocation4 + $0x2c] sm:$0xf]
    %v367 = vld [vmem:[#allocation4 + $0x30] sm:$0xf]
    %v368 = vld [vmem:[#allocation4 + $0x34] sm:$0xf]
    %v369 = vld [vmem:[#allocation4 + $0x38] sm:$0xf]
    %v370 = vld [vmem:[#allocation4 + $0x3c] sm:$0xf]
    %v371 = vld [vmem:[%s6] sm:$0x1]
    %v373 = vperm.slane %v371, 0
    %v391 = vunpack.c.l.b16 %v355
    %v392 = vunpack.c.l.b16 %v356
    %v393 = vunpack.c.l.b16 %v357
    %v394 = vunpack.c.l.b16 %v358
    %v395 = vunpack.c.l.b16 %v359
    %v396 = vunpack.c.l.b16 %v360
    %v397 = vunpack.c.l.b16 %v361
    %v398 = vunpack.c.l.b16 %v362
    %v399 = vunpack.c.l.b16 %v363
    %v400 = vunpack.c.l.b16 %v364
    %v401 = vunpack.c.l.b16 %v365
    %v402 = vunpack.c.l.b16 %v366
    %v403 = vunpack.c.l.b16 %v367
    %v404 = vunpack.c.l.b16 %v368
    %v405 = vunpack.c.l.b16 %v369
    %v406 = vunpack.c.l.b16 %v370
    %v407 = vpack.c.b16 %v392, %v391
    %v408 = vpack.c.b16 %v394, %v393
    %v409 = vpack.c.b16 %v396, %v395
    %v410 = vpack.c.b16 %v398, %v397
    %v411 = vpack.c.b16 %v400, %v399
    %v412 = vpack.c.b16 %v402, %v401
    %v413 = vpack.c.b16 %v404, %v403
    %v414 = vpack.c.b16 %v406, %v405
    %423 = vmatpush.bf16.msra.mxu0 %v414
    %424 = vmatpush.bf16.msra.mxu0 %v413
    %425 = vmatpush.bf16.msra.mxu0 %v412
    %426 = vmatpush.bf16.msra.mxu0 %v411
    %427 = vmatpush.bf16.msra.mxu0 %v410
    %428 = vmatpush.bf16.msra.mxu0 %v409
    %429 = vmatpush.bf16.msra.mxu0 %v408
    %430 = vmatpush.bf16.msra.mxu0 %v407
    %431 = vmatmul.bf16.gmra.mxu0 %v354
    %v432 = vpop.f32.mrf.mxu0
    %v433 = vadd.f32 %v373, %v432
    %v434 = vpop.f32.mrf.mxu0
    %v435 = vadd.f32 %v373, %v434
    %436 = vdwg.mxu0
    %v437 = vmax.f32 %v433, 0.0
    %v438 = vmax.f32 %v435, 0.0
    %v439 = vpack.c.bf16 %v438, %v437
    %v440 = vld [vmem:[#allocation6] sm:$0xf]
    %v441 = vld [vmem:[#allocation6 + $0x4] sm:$0xf]
    %v442 = vld [vmem:[#allocation6 + $0x8] sm:$0xf]
    %v443 = vld [vmem:[#allocation6 + $0xc] sm:$0xf]
    %v444 = vld [vmem:[#allocation6 + $0x10] sm:$0xf]
    %v445 = vld [vmem:[#allocation6 + $0x14] sm:$0xf]
    %v446 = vld [vmem:[#allocation6 + $0x18] sm:$0xf]
    %v447 = vld [vmem:[#allocation6 + $0x1c] sm:$0xf]
    %v448 = vld [vmem:[#allocation6 + $0x20] sm:$0xf]
    %v449 = vld [vmem:[#allocation6 + $0x24] sm:$0xf]
    %v450 = vld [vmem:[#allocation6 + $0x28] sm:$0xf]
    %v451 = vld [vmem:[#allocation6 + $0x2c] sm:$0xf]
    %v452 = vld [vmem:[#allocation6 + $0x30] sm:$0xf]
    %v453 = vld [vmem:[#allocation6 + $0x34] sm:$0xf]
    %v454 = vld [vmem:[#allocation6 + $0x38] sm:$0xf]
    %v455 = vld [vmem:[#allocation6 + $0x3c] sm:$0xf]
    %v456 = vld [vmem:[%s8] sm:$0x1]
    %v458 = vperm.slane %v456, 0
    %v476 = vunpack.c.l.b16 %v440
    %v477 = vunpack.c.l.b16 %v441
    %v478 = vunpack.c.l.b16 %v442
    %v479 = vunpack.c.l.b16 %v443
    %v480 = vunpack.c.l.b16 %v444
    %v481 = vunpack.c.l.b16 %v445
    %v482 = vunpack.c.l.b16 %v446
    %v483 = vunpack.c.l.b16 %v447
    %v484 = vunpack.c.l.b16 %v448
    %v485 = vunpack.c.l.b16 %v449
    %v486 = vunpack.c.l.b16 %v450
    %v487 = vunpack.c.l.b16 %v451
    %v488 = vunpack.c.l.b16 %v452
    %v489 = vunpack.c.l.b16 %v453
    %v490 = vunpack.c.l.b16 %v454
    %v491 = vunpack.c.l.b16 %v455
    %v492 = vpack.c.b16 %v477, %v476
    %v493 = vpack.c.b16 %v479, %v478
    %v494 = vpack.c.b16 %v481, %v480
    %v495 = vpack.c.b16 %v483, %v482
    %v496 = vpack.c.b16 %v485, %v484
    %v497 = vpack.c.b16 %v487, %v486
    %v498 = vpack.c.b16 %v489, %v488
    %v499 = vpack.c.b16 %v491, %v490
    %508 = vmatpush.bf16.msra.mxu0 %v499
    %509 = vmatpush.bf16.msra.mxu0 %v498
    %510 = vmatpush.bf16.msra.mxu0 %v497
    %511 = vmatpush.bf16.msra.mxu0 %v496
    %512 = vmatpush.bf16.msra.mxu0 %v495
    %513 = vmatpush.bf16.msra.mxu0 %v494
    %514 = vmatpush.bf16.msra.mxu0 %v493
    %515 = vmatpush.bf16.msra.mxu0 %v492
    %516 = vmatmul.bf16.gmra.mxu0 %v439
    %v517 = vpop.f32.mrf.mxu0
    %v518 = vadd.f32 %v458, %v517
    %v519 = vpop.f32.mrf.mxu0
    %v520 = vadd.f32 %v458, %v519
    %521 = vdwg.mxu0
    %v522 = vmax.f32 %v518, 0.0
    %v523 = vmax.f32 %v520, 0.0
    %v524 = vpack.c.bf16 %v523, %v522
    %v525 = vld [vmem:[#allocation7] sm:$0xf]
    %v526 = vld [vmem:[#allocation7 + $0x4] sm:$0xf]
    %v527 = vld [vmem:[#allocation7 + $0x8] sm:$0xf]
    %v528 = vld [vmem:[#allocation7 + $0xc] sm:$0xf]
    %v529 = vld [vmem:[#allocation7 + $0x10] sm:$0xf]
    %v530 = vld [vmem:[#allocation7 + $0x14] sm:$0xf]
    %v531 = vld [vmem:[#allocation7 + $0x18] sm:$0xf]
    %v532 = vld [vmem:[#allocation7 + $0x1c] sm:$0xf]
    %v533 = vld [vmem:[#allocation7 + $0x20] sm:$0xf]
    %v534 = vld [vmem:[#allocation7 + $0x24] sm:$0xf]
    %v535 = vld [vmem:[#allocation7 + $0x28] sm:$0xf]
    %v536 = vld [vmem:[#allocation7 + $0x2c] sm:$0xf]
    %v537 = vld [vmem:[#allocation7 + $0x30] sm:$0xf]
    %v538 = vld [vmem:[#allocation7 + $0x34] sm:$0xf]
    %v539 = vld [vmem:[#allocation7 + $0x38] sm:$0xf]
    %v540 = vld [vmem:[#allocation7 + $0x3c] sm:$0xf]
    %v541 = vld [vmem:[%s10] sm:$0x1]
    %v543 = vperm.slane %v541, 0
    %v561 = vunpack.c.l.b16 %v525
    %v562 = vunpack.c.l.b16 %v526
    %v563 = vunpack.c.l.b16 %v527
    %v564 = vunpack.c.l.b16 %v528
    %v565 = vunpack.c.l.b16 %v529
    %v566 = vunpack.c.l.b16 %v530
    %v567 = vunpack.c.l.b16 %v531
    %v568 = vunpack.c.l.b16 %v532
    %v569 = vunpack.c.l.b16 %v533
    %v570 = vunpack.c.l.b16 %v534
    %v571 = vunpack.c.l.b16 %v535
    %v572 = vunpack.c.l.b16 %v536
    %v573 = vunpack.c.l.b16 %v537
    %v574 = vunpack.c.l.b16 %v538
    %v575 = vunpack.c.l.b16 %v539
    %v576 = vunpack.c.l.b16 %v540
    %v577 = vpack.c.b16 %v562, %v561
    %v578 = vpack.c.b16 %v564, %v563
    %v579 = vpack.c.b16 %v566, %v565
    %v580 = vpack.c.b16 %v568, %v567
    %v581 = vpack.c.b16 %v570, %v569
    %v582 = vpack.c.b16 %v572, %v571
    %v583 = vpack.c.b16 %v574, %v573
    %v584 = vpack.c.b16 %v576, %v575
    %593 = vmatpush.bf16.msra.mxu0 %v584
    %594 = vmatpush.bf16.msra.mxu0 %v583
    %595 = vmatpush.bf16.msra.mxu0 %v582
    %596 = vmatpush.bf16.msra.mxu0 %v581
    %597 = vmatpush.bf16.msra.mxu0 %v580
    %598 = vmatpush.bf16.msra.mxu0 %v579
    %599 = vmatpush.bf16.msra.mxu0 %v578
    %600 = vmatpush.bf16.msra.mxu0 %v577
    %601 = vmatmul.bf16.gmra.mxu0 %v524
    %v602 = vpop.f32.mrf.mxu0
    %v603 = vadd.f32 %v543, %v602
    %v604 = vpop.f32.mrf.mxu0
    %v605 = vadd.f32 %v543, %v604
    %606 = vdwg.mxu0
    %607 = vst [vmem:[%s11] sm:$0xff] %v603
    %608 = vst [vmem:[%s11 + $0x8] sm:$0xff] %v605
    // Predicated region
    $region62: #{_fc_forward.1} parent=1 // pred_check
      _
    $region63: #{_fc_forward.1} parent=1 // pred_check_branch
      %610 = sbr.rel (0) target = $region65
    $region64: #{_fc_forward.1} parent=1 // pred_region
      _
    $region65: #{_fc_forward.1} parent=1 // pred_fallthru
      _
    // Predicated region
    $region66: #{_fc_forward.1} parent=1 // pred_check
      _
    $region67: #{_fc_forward.1} parent=1 // pred_check_branch
      %612 = sbr.rel (0) target = $region69
    $region68: #{_fc_forward.1} parent=1 // pred_region
      _
    $region69: #{_fc_forward.1} parent=1 // pred_fallthru
      _
    %613 = vsyncpa [#allocation3], 1
    %614 = vsyncpa [#allocation5], 1
    %615 = vsyncpa [#allocation8], 1

// kernel: _fc_forward.1
$region0: #{_fc_forward.1}
  #allocation0 [shape = 'u32[]', space=smem, size = 0x4, offset = 0x4, fixed_abs, tag = 'smem constant byte address 0x4 - core index']
  #allocation1 [shape = 'u32[72,128]{1,0:T(1,128)}', space=vmem, size = 0x9000, scoped, tag = 'internal scratch']
  %s0 = inlined_call_operand.vmem [shape: f32[16,256], index: 0, kind: input, shape index: {}]
  %s1 = inlined_call_operand.hbm [shape: bf16[256,128], index: 1, kind: input, shape index: {}]
  %s2 = inlined_call_operand.vmem [shape: f32[1,128], index: 2, kind: input, shape index: {}]
  %s3 = inlined_call_operand.vmem [shape: bf16[128,128], index: 3, kind: input, shape index: {}]
  %s4 = inlined_call_operand.vmem [shape: f32[1,128], index: 4, kind: input, shape index: {}]
  %s5 = inlined_call_operand.hbm [shape: bf16[128,128], index: 5, kind: input, shape index: {}]
  %s6 = inlined_call_operand.vmem [shape: f32[1,128], index: 6, kind: input, shape index: {}]
  %s7 = inlined_call_operand.hbm [shape: bf16[128,128], index: 7, kind: input, shape index: {}]
  %s8 = inlined_call_operand.vmem [shape: f32[1,128], index: 8, kind: input, shape index: {}]
  %s9 = inlined_call_operand.hbm [shape: bf16[128,128], index: 9, kind: input, shape index: {}]
  %s10 = inlined_call_operand.vmem [shape: f32[1,128], index: 10, kind: input, shape index: {}]
  %s11 = inlined_call_operand.vmem [shape: f32[16,128], index: 11, kind: output, shape index: {}]
  %s12 = sld [smem:[#allocation0]]
  $region70: #{_fc_forward.1} parent=0
    _
  %s14 = ssub.s32 1, %s12
  %s15 = scalar_select 0, %s14, %s12
  $region1: #{_fc_forward.1} parent=0
    #allocation2 [shape = 'u8[65536]{0}', space=vmem, size = 0x10000, scoped, tag = 'input window, operand 1, single buffered']
    #allocation3 [shape = 's32[1]{0}', space=sflag, size = 0x4, scoped, tag = 'scoped memory for _fc_forward.1']
    #allocation4 [shape = 'u8[32768]{0}', space=vmem, size = 0x8000, scoped, tag = 'input window, operand 5, single buffered']
    #allocation5 [shape = 's32[1]{0}', space=sflag, size = 0x4, scoped, tag = 'scoped memory for _fc_forward.1']
    #allocation6 [shape = 'u8[32768]{0}', space=vmem, size = 0x8000, scoped, tag = 'input window, operand 7, single buffered']
    #allocation7 [shape = 'u8[32768]{0}', space=vmem, size = 0x8000, scoped, tag = 'input window, operand 9, single buffered']
    #allocation8 [shape = 's32[1]{0}', space=sflag, size = 0x4, scoped, tag = 'scoped memory for _fc_forward.1']
    %16 = vsyncpa [#allocation3], 0
    %17 = vsyncpa [#allocation5], 0
    %18 = vsyncpa [#allocation8], 0
    // Predicated region
    $region2: #{_fc_forward.1} parent=1 // pred_check
      _
    $region3: #{_fc_forward.1} parent=1 // pred_check_branch
      %20 = sbr.rel (0) target = $region5
    $region4: #{_fc_forward.1} parent=1 // pred_region
      _
    $region5: #{_fc_forward.1} parent=1 // pred_fallthru
      _
    // Predicated region
    $region6: #{_fc_forward.1} parent=1 // pred_check
      _
    $region7: #{_fc_forward.1} parent=1 // pred_check_branch
      %22 = sbr.rel (0) target = $region9
    $region8: #{_fc_forward.1} parent=1 // pred_region
      %24 = vsyncadd [#allocation3], 0
      %s25 = sshll.u32 %s1, 4
      %s26 = int_to_ptr.hbm [resolvable:$true] %s25
      %s27 = sshll.u32 [#allocation2], 4
      %s28 = int_to_ptr.vmem [resolvable:$true] %s27
      %33 = dma.hbm_to_vmem [thread:$0]  %s26, 2048, %s28, [#allocation3], 64, 64, 4
    $region9: #{_fc_forward.1} parent=1 // pred_fallthru
      _
    // Predicated region
    $region10: #{_fc_forward.1} parent=1 // pred_check
      _
    $region11: #{_fc_forward.1} parent=1 // pred_check_branch
      %35 = sbr.rel (0) target = $region13
    $region12: #{_fc_forward.1} parent=1 // pred_region
      _
    $region13: #{_fc_forward.1} parent=1 // pred_fallthru
      _
    // Predicated region
    $region14: #{_fc_forward.1} parent=1 // pred_check
      _
    $region15: #{_fc_forward.1} parent=1 // pred_check_branch
      %37 = sbr.rel (0) target = $region17
    $region16: #{_fc_forward.1} parent=1 // pred_region
      _
    $region17: #{_fc_forward.1} parent=1 // pred_fallthru
      _
    // Predicated region
    $region18: #{_fc_forward.1} parent=1 // pred_check
      _
    $region19: #{_fc_forward.1} parent=1 // pred_check_branch
      %39 = sbr.rel (0) target = $region21
    $region20: #{_fc_forward.1} parent=1 // pred_region
      _
    $region21: #{_fc_forward.1} parent=1 // pred_fallthru
      _
    // Predicated region
    $region22: #{_fc_forward.1} parent=1 // pred_check
      _
    $region23: #{_fc_forward.1} parent=1 // pred_check_branch
      %41 = sbr.rel (0) target = $region25
    $region24: #{_fc_forward.1} parent=1 // pred_region
      %43 = vsyncadd [#allocation5], 0
      %s44 = sshll.u32 %s5, 4
      %s45 = int_to_ptr.hbm [resolvable:$true] %s44
      %s46 = sshll.u32 [#allocation4], 4
      %s47 = int_to_ptr.vmem [resolvable:$true] %s46
      %52 = dma.hbm_to_vmem [thread:$0]  %s45, 1024, %s47, [#allocation5], 64, 64, 4
    $region25: #{_fc_forward.1} parent=1 // pred_fallthru
      _
    // Predicated region
    $region26: #{_fc_forward.1} parent=1 // pred_check
      _
    $region27: #{_fc_forward.1} parent=1 // pred_check_branch
      %54 = sbr.rel (0) target = $region29
    $region28: #{_fc_forward.1} parent=1 // pred_region
      _
    $region29: #{_fc_forward.1} parent=1 // pred_fallthru
      _
    // Predicated region
    $region30: #{_fc_forward.1} parent=1 // pred_check
      _
    $region31: #{_fc_forward.1} parent=1 // pred_check_branch
      %56 = sbr.rel (0) target = $region33
    $region32: #{_fc_forward.1} parent=1 // pred_region
      %58 = vsyncadd [#allocation5], 0
      %s59 = sshll.u32 %s7, 4
      %s60 = int_to_ptr.hbm [resolvable:$true] %s59
      %s61 = sshll.u32 [#allocation6], 4
      %s62 = int_to_ptr.vmem [resolvable:$true] %s61
      %67 = dma.hbm_to_vmem [thread:$0]  %s60, 1024, %s62, [#allocation5], 64, 64, 4
    $region33: #{_fc_forward.1} parent=1 // pred_fallthru
      _
    // Predicated region
    $region34: #{_fc_forward.1} parent=1 // pred_check
      _
    $region35: #{_fc_forward.1} parent=1 // pred_check_branch
      %69 = sbr.rel (0) target = $region37
    $region36: #{_fc_forward.1} parent=1 // pred_region
      _
    $region37: #{_fc_forward.1} parent=1 // pred_fallthru
      _
    // Predicated region
    $region38: #{_fc_forward.1} parent=1 // pred_check
      _
    $region39: #{_fc_forward.1} parent=1 // pred_check_branch
      %71 = sbr.rel (0) target = $region41
    $region40: #{_fc_forward.1} parent=1 // pred_region
      %73 = vsyncadd [#allocation8], 0
      %s74 = sshll.u32 %s9, 4
      %s75 = int_to_ptr.hbm [resolvable:$true] %s74
      %s76 = sshll.u32 [#allocation7], 4
      %s77 = int_to_ptr.vmem [resolvable:$true] %s76
      %82 = dma.hbm_to_vmem [thread:$0]  %s75, 1024, %s77, [#allocation8], 64, 64, 4
    $region41: #{_fc_forward.1} parent=1 // pred_fallthru
      _
    // Predicated region
    $region42: #{_fc_forward.1} parent=1 // pred_check
      _
    $region43: #{_fc_forward.1} parent=1 // pred_check_branch
      %84 = sbr.rel (0) target = $region45
    $region44: #{_fc_forward.1} parent=1 // pred_region
      _
    $region45: #{_fc_forward.1} parent=1 // pred_fallthru
      _
    // Predicated region
    $region46: #{_fc_forward.1} parent=1 // pred_check
      _
    $region47: #{_fc_forward.1} parent=1 // pred_check_branch
      %86 = sbr.rel (0) target = $region49
    $region48: #{_fc_forward.1} parent=1 // pred_region
      %88 = dma.done [#allocation3], 2048
    $region49: #{_fc_forward.1} parent=1 // pred_fallthru
      _
    // Predicated region
    $region50: #{_fc_forward.1} parent=1 // pred_check
      _
    $region51: #{_fc_forward.1} parent=1 // pred_check_branch
      %90 = sbr.rel (0) target = $region53
    $region52: #{_fc_forward.1} parent=1 // pred_region
      %92 = dma.done [#allocation5], 1024
    $region53: #{_fc_forward.1} parent=1 // pred_fallthru
      _
    // Predicated region
    $region54: #{_fc_forward.1} parent=1 // pred_check
      _
    $region55: #{_fc_forward.1} parent=1 // pred_check_branch
      %94 = sbr.rel (0) target = $region57
    $region56: #{_fc_forward.1} parent=1 // pred_region
      %96 = dma.done [#allocation5], 1024
    $region57: #{_fc_forward.1} parent=1 // pred_fallthru
      _
    // Predicated region
    $region58: #{_fc_forward.1} parent=1 // pred_check
      _
    $region59: #{_fc_forward.1} parent=1 // pred_check_branch
      %98 = sbr.rel (0) target = $region61
    $region60: #{_fc_forward.1} parent=1 // pred_region
      %100 = dma.done [#allocation8], 1024
    $region61: #{_fc_forward.1} parent=1 // pred_fallthru
      _
    %v101 = vld [vmem:[%s0] sm:$0xff]
    %v102 = vld [vmem:[%s0 + $0x8] sm:$0xff]
    %v103 = vld [vmem:[%s0 + $0x10] sm:$0xff]
    %v104 = vld [vmem:[%s0 + $0x18] sm:$0xff]
    %v105 = vpack.c.bf16 %v103, %v101
    %v106 = vpack.c.bf16 %v104, %v102
    %v107 = vld [vmem:[#allocation2] sm:$0xf]
    %v108 = vld [vmem:[#allocation2 + $0x4] sm:$0xf]
    %v109 = vld [vmem:[#allocation2 + $0x8] sm:$0xf]
    %v110 = vld [vmem:[#allocation2 + $0xc] sm:$0xf]
    %v111 = vld [vmem:[#allocation2 + $0x10] sm:$0xf]
    %v112 = vld [vmem:[#allocation2 + $0x14] sm:$0xf]
    %v113 = vld [vmem:[#allocation2 + $0x18] sm:$0xf]
    %v114 = vld [vmem:[#allocation2 + $0x1c] sm:$0xf]
    %v115 = vld [vmem:[#allocation2 + $0x20] sm:$0xf]
    %v116 = vld [vmem:[#allocation2 + $0x24] sm:$0xf]
    %v117 = vld [vmem:[#allocation2 + $0x28] sm:$0xf]
    %v118 = vld [vmem:[#allocation2 + $0x2c] sm:$0xf]
    %v119 = vld [vmem:[#allocation2 + $0x30] sm:$0xf]
    %v120 = vld [vmem:[#allocation2 + $0x34] sm:$0xf]
    %v121 = vld [vmem:[#allocation2 + $0x38] sm:$0xf]
    %v122 = vld [vmem:[#allocation2 + $0x3c] sm:$0xf]
    %v123 = vld [vmem:[#allocation2 + $0x40] sm:$0xf]
    %v124 = vld [vmem:[#allocation2 + $0x44] sm:$0xf]
    %v125 = vld [vmem:[#allocation2 + $0x48] sm:$0xf]
    %v126 = vld [vmem:[#allocation2 + $0x4c] sm:$0xf]
    %v127 = vld [vmem:[#allocation2 + $0x50] sm:$0xf]
    %v128 = vld [vmem:[#allocation2 + $0x54] sm:$0xf]
    %v129 = vld [vmem:[#allocation2 + $0x58] sm:$0xf]
    %v130 = vld [vmem:[#allocation2 + $0x5c] sm:$0xf]
    %v131 = vld [vmem:[#allocation2 + $0x60] sm:$0xf]
    %v132 = vld [vmem:[#allocation2 + $0x64] sm:$0xf]
    %v133 = vld [vmem:[#allocation2 + $0x68] sm:$0xf]
    %v134 = vld [vmem:[#allocation2 + $0x6c] sm:$0xf]
    %v135 = vld [vmem:[#allocation2 + $0x70] sm:$0xf]
    %v136 = vld [vmem:[#allocation2 + $0x74] sm:$0xf]
    %v137 = vld [vmem:[#allocation2 + $0x78] sm:$0xf]
    %v138 = vld [vmem:[#allocation2 + $0x7c] sm:$0xf]
    %v139 = vld [vmem:[%s2] sm:$0x1]
    %v141 = vperm.slane %v139, 0
    %v175 = vunpack.c.l.b16 %v107
    %v176 = vunpack.c.l.b16 %v108
    %v177 = vunpack.c.l.b16 %v109
    %v178 = vunpack.c.l.b16 %v110
    %v179 = vunpack.c.l.b16 %v111
    %v180 = vunpack.c.l.b16 %v112
    %v181 = vunpack.c.l.b16 %v113
    %v182 = vunpack.c.l.b16 %v114
    %v183 = vunpack.c.l.b16 %v115
    %v184 = vunpack.c.l.b16 %v116
    %v185 = vunpack.c.l.b16 %v117
    %v186 = vunpack.c.l.b16 %v118
    %v187 = vunpack.c.l.b16 %v119
    %v188 = vunpack.c.l.b16 %v120
    %v189 = vunpack.c.l.b16 %v121
    %v190 = vunpack.c.l.b16 %v122
    %v191 = vunpack.c.l.b16 %v123
    %v192 = vunpack.c.l.b16 %v124
    %v193 = vunpack.c.l.b16 %v125
    %v194 = vunpack.c.l.b16 %v126
    %v195 = vunpack.c.l.b16 %v127
    %v196 = vunpack.c.l.b16 %v128
    %v197 = vunpack.c.l.b16 %v129
    %v198 = vunpack.c.l.b16 %v130
    %v199 = vunpack.c.l.b16 %v131
    %v200 = vunpack.c.l.b16 %v132
    %v201 = vunpack.c.l.b16 %v133
    %v202 = vunpack.c.l.b16 %v134
    %v203 = vunpack.c.l.b16 %v135
    %v204 = vunpack.c.l.b16 %v136
    %v205 = vunpack.c.l.b16 %v137
    %v206 = vunpack.c.l.b16 %v138
    %v207 = vpack.c.b16 %v176, %v175
    %v208 = vpack.c.b16 %v178, %v177
    %v209 = vpack.c.b16 %v180, %v179
    %v210 = vpack.c.b16 %v182, %v181
    %v211 = vpack.c.b16 %v184, %v183
    %v212 = vpack.c.b16 %v186, %v185
    %v213 = vpack.c.b16 %v188, %v187
    %v214 = vpack.c.b16 %v190, %v189
    %v215 = vpack.c.b16 %v192, %v191
    %v216 = vpack.c.b16 %v194, %v193
    %v217 = vpack.c.b16 %v196, %v195
    %v218 = vpack.c.b16 %v198, %v197
    %v219 = vpack.c.b16 %v200, %v199
    %v220 = vpack.c.b16 %v202, %v201
    %v221 = vpack.c.b16 %v204, %v203
    %v222 = vpack.c.b16 %v206, %v205
    %239 = vmatpush.bf16.msra.mxu0 %v214
    %240 = vmatpush.bf16.msra.mxu0 %v213
    %241 = vmatpush.bf16.msra.mxu0 %v212
    %242 = vmatpush.bf16.msra.mxu0 %v211
    %243 = vmatpush.bf16.msra.mxu0 %v210
    %244 = vmatpush.bf16.msra.mxu0 %v209
    %245 = vmatpush.bf16.msra.mxu0 %v208
    %246 = vmatpush.bf16.msra.mxu0 %v207
    %247 = vmatmul.bf16.gmra.mxu0 %v105
    %v248 = vpop.f32.mrf.mxu0
    %v249 = vadd.f32 %v141, %v248
    %v250 = vpop.f32.mrf.mxu0
    %v251 = vadd.f32 %v141, %v250
    %252 = vdwg.mxu0
    %253 = vmatpush.bf16.msra.mxu0 %v222
    %254 = vmatpush.bf16.msra.mxu0 %v221
    %255 = vmatpush.bf16.msra.mxu0 %v220
    %256 = vmatpush.bf16.msra.mxu0 %v219
    %257 = vmatpush.bf16.msra.mxu0 %v218
    %258 = vmatpush.bf16.msra.mxu0 %v217
    %259 = vmatpush.bf16.msra.mxu0 %v216
    %260 = vmatpush.bf16.msra.mxu0 %v215
    %261 = vmatmul.bf16.gmra.mxu0 %v106
    %v262 = vpop.f32.mrf.mxu0
    %v263 = vadd.f32 %v249, %v262
    %v264 = vpop.f32.mrf.mxu0
    %v265 = vadd.f32 %v251, %v264
    %266 = vdwg.mxu0
    %v267 = vmax.f32 %v263, 0.0
    %v268 = vmax.f32 %v265, 0.0
    %v269 = vpack.c.bf16 %v268, %v267
    %v270 = vld [vmem:[%s3] sm:$0xf]
    %v271 = vld [vmem:[%s3 + $0x4] sm:$0xf]
    %v272 = vld [vmem:[%s3 + $0x8] sm:$0xf]
    %v273 = vld [vmem:[%s3 + $0xc] sm:$0xf]
    %v274 = vld [vmem:[%s3 + $0x10] sm:$0xf]
    %v275 = vld [vmem:[%s3 + $0x14] sm:$0xf]
    %v276 = vld [vmem:[%s3 + $0x18] sm:$0xf]
    %v277 = vld [vmem:[%s3 + $0x1c] sm:$0xf]
    %v278 = vld [vmem:[%s3 + $0x20] sm:$0xf]
    %v279 = vld [vmem:[%s3 + $0x24] sm:$0xf]
    %v280 = vld [vmem:[%s3 + $0x28] sm:$0xf]
    %v281 = vld [vmem:[%s3 + $0x2c] sm:$0xf]
    %v282 = vld [vmem:[%s3 + $0x30] sm:$0xf]
    %v283 = vld [vmem:[%s3 + $0x34] sm:$0xf]
    %v284 = vld [vmem:[%s3 + $0x38] sm:$0xf]
    %v285 = vld [vmem:[%s3 + $0x3c] sm:$0xf]
    %v286 = vld [vmem:[%s4] sm:$0x1]
    %v288 = vperm.slane %v286, 0
    %v306 = vunpack.c.l.b16 %v270
    %v307 = vunpack.c.l.b16 %v271
    %v308 = vunpack.c.l.b16 %v272
    %v309 = vunpack.c.l.b16 %v273
    %v310 = vunpack.c.l.b16 %v274
    %v311 = vunpack.c.l.b16 %v275
    %v312 = vunpack.c.l.b16 %v276
    %v313 = vunpack.c.l.b16 %v277
    %v314 = vunpack.c.l.b16 %v278
    %v315 = vunpack.c.l.b16 %v279
    %v316 = vunpack.c.l.b16 %v280
    %v317 = vunpack.c.l.b16 %v281
    %v318 = vunpack.c.l.b16 %v282
    %v319 = vunpack.c.l.b16 %v283
    %v320 = vunpack.c.l.b16 %v284
    %v321 = vunpack.c.l.b16 %v285
    %v322 = vpack.c.b16 %v307, %v306
    %v323 = vpack.c.b16 %v309, %v308
    %v324 = vpack.c.b16 %v311, %v310
    %v325 = vpack.c.b16 %v313, %v312
    %v326 = vpack.c.b16 %v315, %v314
    %v327 = vpack.c.b16 %v317, %v316
    %v328 = vpack.c.b16 %v319, %v318
    %v329 = vpack.c.b16 %v321, %v320
    %338 = vmatpush.bf16.msra.mxu0 %v329
    %339 = vmatpush.bf16.msra.mxu0 %v328
    %340 = vmatpush.bf16.msra.mxu0 %v327
    %341 = vmatpush.bf16.msra.mxu0 %v326
    %342 = vmatpush.bf16.msra.mxu0 %v325
    %343 = vmatpush.bf16.msra.mxu0 %v324
    %344 = vmatpush.bf16.msra.mxu0 %v323
    %345 = vmatpush.bf16.msra.mxu0 %v322
    %346 = vmatmul.bf16.gmra.mxu0 %v269
    %v347 = vpop.f32.mrf.mxu0
    %v348 = vadd.f32 %v288, %v347
    %v349 = vpop.f32.mrf.mxu0
    %v350 = vadd.f32 %v288, %v349
    %351 = vdwg.mxu0
    %v352 = vmax.f32 %v348, 0.0
    %v353 = vmax.f32 %v350, 0.0
    %v354 = vpack.c.bf16 %v353, %v352
    %v355 = vld [vmem:[#allocation4] sm:$0xf]
    %v356 = vld [vmem:[#allocation4 + $0x4] sm:$0xf]
    %v357 = vld [vmem:[#allocation4 + $0x8] sm:$0xf]
    %v358 = vld [vmem:[#allocation4 + $0xc] sm:$0xf]
    %v359 = vld [vmem:[#allocation4 + $0x10] sm:$0xf]
    %v360 = vld [vmem:[#allocation4 + $0x14] sm:$0xf]
    %v361 = vld [vmem:[#allocation4 + $0x18] sm:$0xf]
    %v362 = vld [vmem:[#allocation4 + $0x1c] sm:$0xf]
    %v363 = vld [vmem:[#allocation4 + $0x20] sm:$0xf]
    %v364 = vld [vmem:[#allocation4 + $0x24] sm:$0xf]
    %v365 = vld [vmem:[#allocation4 + $0x28] sm:$0xf]
    %v366 = vld [vmem:[#allocation4 + $0x2c] sm:$0xf]
    %v367 = vld [vmem:[#allocation4 + $0x30] sm:$0xf]
    %v368 = vld [vmem:[#allocation4 + $0x34] sm:$0xf]
    %v369 = vld [vmem:[#allocation4 + $0x38] sm:$0xf]
    %v370 = vld [vmem:[#allocation4 + $0x3c] sm:$0xf]
    %v371 = vld [vmem:[%s6] sm:$0x1]
    %v373 = vperm.slane %v371, 0
    %v391 = vunpack.c.l.b16 %v355
    %v392 = vunpack.c.l.b16 %v356
    %v393 = vunpack.c.l.b16 %v357
    %v394 = vunpack.c.l.b16 %v358
    %v395 = vunpack.c.l.b16 %v359
    %v396 = vunpack.c.l.b16 %v360
    %v397 = vunpack.c.l.b16 %v361
    %v398 = vunpack.c.l.b16 %v362
    %v399 = vunpack.c.l.b16 %v363
    %v400 = vunpack.c.l.b16 %v364
    %v401 = vunpack.c.l.b16 %v365
    %v402 = vunpack.c.l.b16 %v366
    %v403 = vunpack.c.l.b16 %v367
    %v404 = vunpack.c.l.b16 %v368
    %v405 = vunpack.c.l.b16 %v369
    %v406 = vunpack.c.l.b16 %v370
    %v407 = vpack.c.b16 %v392, %v391
    %v408 = vpack.c.b16 %v394, %v393
    %v409 = vpack.c.b16 %v396, %v395
    %v410 = vpack.c.b16 %v398, %v397
    %v411 = vpack.c.b16 %v400, %v399
    %v412 = vpack.c.b16 %v402, %v401
    %v413 = vpack.c.b16 %v404, %v403
    %v414 = vpack.c.b16 %v406, %v405
    %423 = vmatpush.bf16.msra.mxu0 %v414
    %424 = vmatpush.bf16.msra.mxu0 %v413
    %425 = vmatpush.bf16.msra.mxu0 %v412
    %426 = vmatpush.bf16.msra.mxu0 %v411
    %427 = vmatpush.bf16.msra.mxu0 %v410
    %428 = vmatpush.bf16.msra.mxu0 %v409
    %429 = vmatpush.bf16.msra.mxu0 %v408
    %430 = vmatpush.bf16.msra.mxu0 %v407
    %431 = vmatmul.bf16.gmra.mxu0 %v354
    %v432 = vpop.f32.mrf.mxu0
    %v433 = vadd.f32 %v373, %v432
    %v434 = vpop.f32.mrf.mxu0
    %v435 = vadd.f32 %v373, %v434
    %436 = vdwg.mxu0
    %v437 = vmax.f32 %v433, 0.0
    %v438 = vmax.f32 %v435, 0.0
    %v439 = vpack.c.bf16 %v438, %v437
    %v440 = vld [vmem:[#allocation6] sm:$0xf]
    %v441 = vld [vmem:[#allocation6 + $0x4] sm:$0xf]
    %v442 = vld [vmem:[#allocation6 + $0x8] sm:$0xf]
    %v443 = vld [vmem:[#allocation6 + $0xc] sm:$0xf]
    %v444 = vld [vmem:[#allocation6 + $0x10] sm:$0xf]
    %v445 = vld [vmem:[#allocation6 + $0x14] sm:$0xf]
    %v446 = vld [vmem:[#allocation6 + $0x18] sm:$0xf]
    %v447 = vld [vmem:[#allocation6 + $0x1c] sm:$0xf]
    %v448 = vld [vmem:[#allocation6 + $0x20] sm:$0xf]
    %v449 = vld [vmem:[#allocation6 + $0x24] sm:$0xf]
    %v450 = vld [vmem:[#allocation6 + $0x28] sm:$0xf]
    %v451 = vld [vmem:[#allocation6 + $0x2c] sm:$0xf]
    %v452 = vld [vmem:[#allocation6 + $0x30] sm:$0xf]
    %v453 = vld [vmem:[#allocation6 + $0x34] sm:$0xf]
    %v454 = vld [vmem:[#allocation6 + $0x38] sm:$0xf]
    %v455 = vld [vmem:[#allocation6 + $0x3c] sm:$0xf]
    %v456 = vld [vmem:[%s8] sm:$0x1]
    %v458 = vperm.slane %v456, 0
    %v476 = vunpack.c.l.b16 %v440
    %v477 = vunpack.c.l.b16 %v441
    %v478 = vunpack.c.l.b16 %v442
    %v479 = vunpack.c.l.b16 %v443
    %v480 = vunpack.c.l.b16 %v444
    %v481 = vunpack.c.l.b16 %v445
    %v482 = vunpack.c.l.b16 %v446
    %v483 = vunpack.c.l.b16 %v447
    %v484 = vunpack.c.l.b16 %v448
    %v485 = vunpack.c.l.b16 %v449
    %v486 = vunpack.c.l.b16 %v450
    %v487 = vunpack.c.l.b16 %v451
    %v488 = vunpack.c.l.b16 %v452
    %v489 = vunpack.c.l.b16 %v453
    %v490 = vunpack.c.l.b16 %v454
    %v491 = vunpack.c.l.b16 %v455
    %v492 = vpack.c.b16 %v477, %v476
    %v493 = vpack.c.b16 %v479, %v478
    %v494 = vpack.c.b16 %v481, %v480
    %v495 = vpack.c.b16 %v483, %v482
    %v496 = vpack.c.b16 %v485, %v484
    %v497 = vpack.c.b16 %v487, %v486
    %v498 = vpack.c.b16 %v489, %v488
    %v499 = vpack.c.b16 %v491, %v490
    %508 = vmatpush.bf16.msra.mxu0 %v499
    %509 = vmatpush.bf16.msra.mxu0 %v498
    %510 = vmatpush.bf16.msra.mxu0 %v497
    %511 = vmatpush.bf16.msra.mxu0 %v496
    %512 = vmatpush.bf16.msra.mxu0 %v495
    %513 = vmatpush.bf16.msra.mxu0 %v494
    %514 = vmatpush.bf16.msra.mxu0 %v493
    %515 = vmatpush.bf16.msra.mxu0 %v492
    %516 = vmatmul.bf16.gmra.mxu0 %v439
    %v517 = vpop.f32.mrf.mxu0
    %v518 = vadd.f32 %v458, %v517
    %v519 = vpop.f32.mrf.mxu0
    %v520 = vadd.f32 %v458, %v519
    %521 = vdwg.mxu0
    %v522 = vmax.f32 %v518, 0.0
    %v523 = vmax.f32 %v520, 0.0
    %v524 = vpack.c.bf16 %v523, %v522
    %v525 = vld [vmem:[#allocation7] sm:$0xf]
    %v526 = vld [vmem:[#allocation7 + $0x4] sm:$0xf]
    %v527 = vld [vmem:[#allocation7 + $0x8] sm:$0xf]
    %v528 = vld [vmem:[#allocation7 + $0xc] sm:$0xf]
    %v529 = vld [vmem:[#allocation7 + $0x10] sm:$0xf]
    %v530 = vld [vmem:[#allocation7 + $0x14] sm:$0xf]
    %v531 = vld [vmem:[#allocation7 + $0x18] sm:$0xf]
    %v532 = vld [vmem:[#allocation7 + $0x1c] sm:$0xf]
    %v533 = vld [vmem:[#allocation7 + $0x20] sm:$0xf]
    %v534 = vld [vmem:[#allocation7 + $0x24] sm:$0xf]
    %v535 = vld [vmem:[#allocation7 + $0x28] sm:$0xf]
    %v536 = vld [vmem:[#allocation7 + $0x2c] sm:$0xf]
    %v537 = vld [vmem:[#allocation7 + $0x30] sm:$0xf]
    %v538 = vld [vmem:[#allocation7 + $0x34] sm:$0xf]
    %v539 = vld [vmem:[#allocation7 + $0x38] sm:$0xf]
    %v540 = vld [vmem:[#allocation7 + $0x3c] sm:$0xf]
    %v541 = vld [vmem:[%s10] sm:$0x1]
    %v543 = vperm.slane %v541, 0
    %v561 = vunpack.c.l.b16 %v525
    %v562 = vunpack.c.l.b16 %v526
    %v563 = vunpack.c.l.b16 %v527
    %v564 = vunpack.c.l.b16 %v528
    %v565 = vunpack.c.l.b16 %v529
    %v566 = vunpack.c.l.b16 %v530
    %v567 = vunpack.c.l.b16 %v531
    %v568 = vunpack.c.l.b16 %v532
    %v569 = vunpack.c.l.b16 %v533
    %v570 = vunpack.c.l.b16 %v534
    %v571 = vunpack.c.l.b16 %v535
    %v572 = vunpack.c.l.b16 %v536
    %v573 = vunpack.c.l.b16 %v537
    %v574 = vunpack.c.l.b16 %v538
    %v575 = vunpack.c.l.b16 %v539
    %v576 = vunpack.c.l.b16 %v540
    %v577 = vpack.c.b16 %v562, %v561
    %v578 = vpack.c.b16 %v564, %v563
    %v579 = vpack.c.b16 %v566, %v565
    %v580 = vpack.c.b16 %v568, %v567
    %v581 = vpack.c.b16 %v570, %v569
    %v582 = vpack.c.b16 %v572, %v571
    %v583 = vpack.c.b16 %v574, %v573
    %v584 = vpack.c.b16 %v576, %v575
    %593 = vmatpush.bf16.msra.mxu0 %v584
    %594 = vmatpush.bf16.msra.mxu0 %v583
    %595 = vmatpush.bf16.msra.mxu0 %v582
    %596 = vmatpush.bf16.msra.mxu0 %v581
    %597 = vmatpush.bf16.msra.mxu0 %v580
    %598 = vmatpush.bf16.msra.mxu0 %v579
    %599 = vmatpush.bf16.msra.mxu0 %v578
    %600 = vmatpush.bf16.msra.mxu0 %v577
    %601 = vmatmul.bf16.gmra.mxu0 %v524
    %v602 = vpop.f32.mrf.mxu0
    %v603 = vadd.f32 %v543, %v602
    %v604 = vpop.f32.mrf.mxu0
    %v605 = vadd.f32 %v543, %v604
    %606 = vdwg.mxu0
    %607 = vst [vmem:[%s11] sm:$0xff] %v603
    %608 = vst [vmem:[%s11 + $0x8] sm:$0xff] %v605
    // Predicated region
    $region62: #{_fc_forward.1} parent=1 // pred_check
      _
    $region63: #{_fc_forward.1} parent=1 // pred_check_branch
      %610 = sbr.rel (0) target = $region65
    $region64: #{_fc_forward.1} parent=1 // pred_region
      _
    $region65: #{_fc_forward.1} parent=1 // pred_fallthru
      _
    // Predicated region
    $region66: #{_fc_forward.1} parent=1 // pred_check
      _
    $region67: #{_fc_forward.1} parent=1 // pred_check_branch
      %612 = sbr.rel (0) target = $region69
    $region68: #{_fc_forward.1} parent=1 // pred_region
      _
    $region69: #{_fc_forward.1} parent=1 // pred_fallthru
      _
    %613 = vsyncpa [#allocation3], 1
    %614 = vsyncpa [#allocation5], 1
    %615 = vsyncpa [#allocation8], 1

</llo_original>
